<compile_context>
chip_gen: v6e
topology: v6e:2x2x1
jax: 0.10.0
libtpu: 0.0.40
codegen_flags: <defaults>
</compile_context>

<pallas_src>
import functools

import jax
import jax.numpy as jnp
from jax.experimental import pallas as pl
from jax.experimental.pallas import tpu as pltpu

EPS = 1e-5


# -----------------------------------------------------------------------------
# Fused ConvBlock kernel
# -----------------------------------------------------------------------------
def _conv_block_kernel(x_ref, w1_ref, w2_ref, g1_ref, b1_ref, g2_ref, b2_ref,
                       mask_ref, out_ref, p1_ref, p2_ref, xp2_ref,
                       *, N, H, W, Cin, Cout, Wp):
    """Fused ConvBlock forward for a batch that fits entirely in VMEM.

    Layout: channels on sublanes, flattened (row-padded) spatial on lanes.

      x_ref   : (N, Cin, PPE)    zero-padded input, flattened rows of width Wp
      w1_ref  : (Cout, 9*Cin)    folded conv1 weights (tap-major, then Cin)
      w2_ref  : (Cout, 9*Cout)   folded conv2 weights
      g*/b*   : (Cout, 1)        BatchNorm gamma / beta
      mask_ref: (1, N*Pout)      1.0 on real output columns, 0.0 on padding
      out_ref : (N, Cout, Pout)  BN2+ReLU output (padded-row flat layout)
      p1_ref  : (9*Cin,  N*Pout) VMEM scratch: im2col operand, layer 1
      p2_ref  : (9*Cout, N*Pout) VMEM scratch: im2col operand, layer 2
      xp2_ref : (Cout, PPE)      VMEM scratch: re-padded layer-1 activation
    """
    Pout = H * Wp
    offs = [kh * Wp + kw for kh in range(3) for kw in range(3)]
    mask = mask_ref[...]                          # (1, N*Pout)
    count = jnp.float32(N * H * W)

    def batchnorm_relu(y, gamma, beta):
        # Training-mode BN over valid (non-padding) positions only; garbage
        # columns are masked out of the stats and zeroed in the result.
        mean = jnp.sum(y * mask, axis=-1, keepdims=True) / count
        var = jnp.sum(jnp.square((y - mean) * mask), axis=-1,
                      keepdims=True) / count
        scale = gamma * jax.lax.rsqrt(var + EPS)
        shift = beta - mean * scale
        return jnp.maximum(y * scale + shift, 0.0) * mask

    # ---- layer 1: im2col (9 lane-shifted slices) + one K=9*Cin MXU matmul ---
    for n in range(N):
        for t, d in enumerate(offs):
            p1_ref[t * Cin:(t + 1) * Cin, n * Pout:(n + 1) * Pout] = (
                x_ref[n, :, d:d + Pout])
    y1 = jnp.dot(w1_ref[...], p1_ref[...], preferred_element_type=jnp.float32)
    a1 = batchnorm_relu(y1, g1_ref[...], b1_ref[...])          # (Cout, N*Pout)

    # ---- re-pad a1 (halo stays zero) and run layer 2 the same way -----------
    xp2_ref[...] = jnp.zeros_like(xp2_ref)        # zero once; data overwritten
    for n in range(N):
        # valid activations land at padded coords (row+1, col+1) == flat +Wp+1;
        # the masked-out columns of a1 are exactly what becomes the zero halo.
        xp2_ref[:, Wp + 1:Wp + 1 + Pout] = a1[:, n * Pout:(n + 1) * Pout]
        for t, d in enumerate(offs):
            p2_ref[t * Cout:(t + 1) * Cout, n * Pout:(n + 1) * Pout] = (
                xp2_ref[:, d:d + Pout])
    y2 = jnp.dot(w2_ref[...], p2_ref[...], preferred_element_type=jnp.float32)
    a2 = batchnorm_relu(y2, g2_ref[...], b2_ref[...])           # (Cout, N*Pout)

    for n in range(N):
        out_ref[n] = a2[:, n * Pout:(n + 1) * Pout]


# -----------------------------------------------------------------------------
# Wrapper
# -----------------------------------------------------------------------------
@jax.jit
def conv_block_forward(x_nchw, params):
    """Full ConvBlock forward.  Input / output in PyTorch NCHW layout."""
    N, Cin, H, W = x_nchw.shape
    Cout = params["w1"].shape[-1]
    Wp = ((W + 2) + 7) // 8 * 8      # padded row width (keeps lane offsets tidy)
    Pout = H * Wp                    # flattened per-image output block
    PPE = (H + 3) * Wp               # flattened padded image (+1 top, +2 bottom rows)

    # Zero-pad once in XLA (tiny) and flatten rows; the kernel then only needs
    # contiguous lane-shifted slices of this buffer (tap == flat shift).
    xpad = jnp.pad(x_nchw.astype(jnp.float32),
                   ((0, 0), (0, 0), (1, 2), (1, Wp - W - 1))).reshape(N, Cin, PPE)

    # Fold the 3x3 taps into the contraction dim: (Cout, 9*Cin), tap-major.
    w1f = params["w1"].astype(jnp.float32).reshape(9 * Cin, Cout).T
    w2f = params["w2"].astype(jnp.float32).reshape(9 * Cout, Cout).T

    g1 = params["g1"].astype(jnp.float32).reshape(Cout, 1)
    b1 = params["b1"].astype(jnp.float32).reshape(Cout, 1)
    g2 = params["g2"].astype(jnp.float32).reshape(Cout, 1)
    b2 = params["b2"].astype(jnp.float32).reshape(Cout, 1)

    # 1.0 on real output columns (col < W within each padded row), else 0.0.
    mask = ((jnp.arange(N * Pout) % Wp) < W).astype(jnp.float32).reshape(1, -1)

    kernel = functools.partial(_conv_block_kernel, N=N, H=H, W=W,
                               Cin=Cin, Cout=Cout, Wp=Wp)

    out_pf = pl.pallas_call(
        kernel,
        out_shape=jax.ShapeDtypeStruct((N, Cout, Pout), jnp.float32),
        grid_spec=pltpu.PrefetchScalarGridSpec(
            num_scalar_prefetch=0,
            grid=(1,),
            in_specs=[
                pl.BlockSpec((N, Cin, PPE), lambda i: (0, 0, 0)),
                pl.BlockSpec((Cout, 9 * Cin), lambda i: (0, 0)),
                pl.BlockSpec((Cout, 9 * Cout), lambda i: (0, 0)),
                pl.BlockSpec((Cout, 1), lambda i: (0, 0)),
                pl.BlockSpec((Cout, 1), lambda i: (0, 0)),
                pl.BlockSpec((Cout, 1), lambda i: (0, 0)),
                pl.BlockSpec((Cout, 1), lambda i: (0, 0)),
                pl.BlockSpec((1, N * Pout), lambda i: (0, 0)),
            ],
            out_specs=pl.BlockSpec((N, Cout, Pout), lambda i: (0, 0, 0)),
            scratch_shapes=[
                pltpu.VMEM((9 * Cin, N * Pout), jnp.float32),   # im2col, layer 1
                pltpu.VMEM((9 * Cout, N * Pout), jnp.float32),  # im2col, layer 2
                pltpu.VMEM((Cout, PPE), jnp.float32),           # re-padded a1
            ],
        ),
        compiler_params=pltpu.CompilerParams(
            dimension_semantics=("arbitrary",)),
    )(xpad, w1f, w2f, g1, b1, g2, b2, mask)

    # Drop the padding columns; the result is already NCHW-contiguous.
    return out_pf.reshape(N, Cout, H, Wp)[..., :W]


# -----------------------------------------------------------------------------
# Pure-JAX reference (for correctness check)
# -----------------------------------------------------------------------------
def reference_forward(x_nchw, params):
    def conv(x, w_hwio):
        return jax.lax.conv_general_dilated(
            x, w_hwio, window_strides=(1, 1), padding="SAME",
            dimension_numbers=("NCHW", "HWIO", "NCHW"),
            precision=jax.lax.Precision.HIGHEST)

    def bn_relu_ref(y, gamma, beta):
        mean = jnp.mean(y, axis=(0, 2, 3), keepdims=True)
        var = jnp.mean((y - mean) ** 2, axis=(0, 2, 3), keepdims=True)
        yn = (y - mean) / jnp.sqrt(var + EPS)
        yn = yn * gamma.reshape(1, -1, 1, 1) + beta.reshape(1, -1, 1, 1)
        return jnp.maximum(yn, 0.0)

    h = bn_relu_ref(conv(x_nchw, params["w1"]), params["g1"], params["b1"])
    return bn_relu_ref(conv(h, params["w2"]), params["g2"], params["b2"])


# -----------------------------------------------------------------------------
if __name__ == "__main__":
    N, Cin, Cout, H, W = 2, 4, 8, 16, 16

    keys = jax.random.split(jax.random.PRNGKey(0), 7)
    x = jax.random.normal(keys[0], (N, Cin, H, W), jnp.float32)
    params = {
        # conv weights stored in HWIO (equivalent to transposing PyTorch's
        # OIHW (Cout, Cin, 3, 3) weights).
        "w1": 0.1 * jax.random.normal(keys[1], (3, 3, Cin, Cout), jnp.float32),
        "g1": 1.0 + 0.1 * jax.random.normal(keys[2], (Cout,), jnp.float32),
        "b1": 0.1 * jax.random.normal(keys[3], (Cout,), jnp.float32),
        "w2": 0.1 * jax.random.normal(keys[4], (3, 3, Cout, Cout), jnp.float32),
        "g2": 1.0 + 0.1 * jax.random.normal(keys[5], (Cout,), jnp.float32),
        "b2": 0.1 * jax.random.normal(keys[6], (Cout,), jnp.float32),
    }

    out = jax.block_until_ready(conv_block_forward(x, params))
    ref = jax.block_until_ready(reference_forward(x, params))

    assert out.shape == (N, Cout, H, W), out.shape
    assert bool(jnp.all(jnp.isfinite(out)))
    assert bool(jnp.allclose(out, ref, atol=2e-2, rtol=2e-2)), (
        "max abs diff = %f" % float(jnp.max(jnp.abs(out - ref))))

    print("KERNEL_OK")
</pallas_src>

<mosaic_0001>
module attributes {stable_mosaic.version = 11 : i64} {
  func.func @_conv_block_kernel(%arg0: i32, %arg1: memref<2x4x456xf32, #tpu.memory_space<vmem>>, %arg2: memref<8x36xf32, #tpu.memory_space<vmem>>, %arg3: memref<8x72xf32, #tpu.memory_space<vmem>>, %arg4: memref<8x1xf32, #tpu.memory_space<vmem>>, %arg5: memref<8x1xf32, #tpu.memory_space<vmem>>, %arg6: memref<8x1xf32, #tpu.memory_space<vmem>>, %arg7: memref<8x1xf32, #tpu.memory_space<vmem>>, %arg8: memref<1x768xf32, #tpu.memory_space<vmem>>, %arg9: memref<2x8x384xf32, #tpu.memory_space<vmem>>, %arg10: memref<36x768xf32, #tpu.memory_space<vmem>>, %arg11: memref<72x768xf32, #tpu.memory_space<vmem>>, %arg12: memref<8x456xf32, #tpu.memory_space<vmem>>) attributes {dimension_semantics = [#tpu.dimension_semantics<arbitrary>], iteration_bounds = array<i64: 1>, scalar_prefetch = 0 : i64, scratch_operands = 3 : i64, tpu.core_type = #tpu.core_type<tc>, window_params = [{pipeline_mode = #tpu.pipeline_mode<synchronous>, transform_indices = @transform_0, window_bounds = array<i64: 2, 4, 456>}, {pipeline_mode = #tpu.pipeline_mode<synchronous>, transform_indices = @transform_1, window_bounds = array<i64: 8, 36>}, {pipeline_mode = #tpu.pipeline_mode<synchronous>, transform_indices = @transform_2, window_bounds = array<i64: 8, 72>}, {pipeline_mode = #tpu.pipeline_mode<synchronous>, transform_indices = @transform_3, window_bounds = array<i64: 8, 1>}, {pipeline_mode = #tpu.pipeline_mode<synchronous>, transform_indices = @transform_4, window_bounds = array<i64: 8, 1>}, {pipeline_mode = #tpu.pipeline_mode<synchronous>, transform_indices = @transform_5, window_bounds = array<i64: 8, 1>}, {pipeline_mode = #tpu.pipeline_mode<synchronous>, transform_indices = @transform_6, window_bounds = array<i64: 8, 1>}, {pipeline_mode = #tpu.pipeline_mode<synchronous>, transform_indices = @transform_7, window_bounds = array<i64: 1, 768>}, {pipeline_mode = #tpu.pipeline_mode<synchronous>, transform_indices = @transform_8, window_bounds = array<i64: 2, 8, 384>}]} {
    %c0 = arith.constant 0 : index
    %c0_0 = arith.constant 0 : index
    %0 = vector.load %arg8[%c0, %c0_0] : memref<1x768xf32, #tpu.memory_space<vmem>>, vector<1x768xf32>
    %c0_1 = arith.constant 0 : index
    %c0_2 = arith.constant 0 : index
    %c0_3 = arith.constant 0 : index
    %1 = vector.load %arg1[%c0_1, %c0_2, %c0_3] : memref<2x4x456xf32, #tpu.memory_space<vmem>>, vector<1x4x384xf32>
    %2 = vector.shape_cast %1 : vector<1x4x384xf32> to vector<4x384xf32>
    %c0_4 = arith.constant 0 : index
    %c0_5 = arith.constant 0 : index
    %3 = vector.load %arg10[%c0_4, %c0_5] : memref<36x768xf32, #tpu.memory_space<vmem>>, vector<4x384xf32>
    tpu.vector_store %arg10[%c0_4, %c0_5], %2 {strides = array<i32>} : memref<36x768xf32, #tpu.memory_space<vmem>>, vector<4x384xf32>,
    %c0_6 = arith.constant 0 : index
    %c0_7 = arith.constant 0 : index
    %c1 = arith.constant 1 : index
    %4 = vector.load %arg1[%c0_6, %c0_7, %c1] : memref<2x4x456xf32, #tpu.memory_space<vmem>>, vector<1x4x384xf32>
    %5 = vector.shape_cast %4 : vector<1x4x384xf32> to vector<4x384xf32>
    %c4 = arith.constant 4 : index
    %c0_8 = arith.constant 0 : index
    %6 = vector.load %arg10[%c4, %c0_8] : memref<36x768xf32, #tpu.memory_space<vmem>>, vector<4x384xf32>
    tpu.vector_store %arg10[%c4, %c0_8], %5 {strides = array<i32>} : memref<36x768xf32, #tpu.memory_space<vmem>>, vector<4x384xf32>,
    %c0_9 = arith.constant 0 : index
    %c0_10 = arith.constant 0 : index
    %c2 = arith.constant 2 : index
    %7 = vector.load %arg1[%c0_9, %c0_10, %c2] : memref<2x4x456xf32, #tpu.memory_space<vmem>>, vector<1x4x384xf32>
    %8 = vector.shape_cast %7 : vector<1x4x384xf32> to vector<4x384xf32>
    %c8 = arith.constant 8 : index
    %c0_11 = arith.constant 0 : index
    %9 = vector.load %arg10[%c8, %c0_11] : memref<36x768xf32, #tpu.memory_space<vmem>>, vector<4x384xf32>
    tpu.vector_store %arg10[%c8, %c0_11], %8 {strides = array<i32>} : memref<36x768xf32, #tpu.memory_space<vmem>>, vector<4x384xf32>,
    %c0_12 = arith.constant 0 : index
    %c0_13 = arith.constant 0 : index
    %c24 = arith.constant 24 : index
    %10 = vector.load %arg1[%c0_12, %c0_13, %c24] : memref<2x4x456xf32, #tpu.memory_space<vmem>>, vector<1x4x384xf32>
    %11 = vector.shape_cast %10 : vector<1x4x384xf32> to vector<4x384xf32>
    %c12 = arith.constant 12 : index
    %c0_14 = arith.constant 0 : index
    %12 = vector.load %arg10[%c12, %c0_14] : memref<36x768xf32, #tpu.memory_space<vmem>>, vector<4x384xf32>
    tpu.vector_store %arg10[%c12, %c0_14], %11 {strides = array<i32>} : memref<36x768xf32, #tpu.memory_space<vmem>>, vector<4x384xf32>,
    %c0_15 = arith.constant 0 : index
    %c0_16 = arith.constant 0 : index
    %c25 = arith.constant 25 : index
    %13 = vector.load %arg1[%c0_15, %c0_16, %c25] : memref<2x4x456xf32, #tpu.memory_space<vmem>>, vector<1x4x384xf32>
    %14 = vector.shape_cast %13 : vector<1x4x384xf32> to vector<4x384xf32>
    %c16 = arith.constant 16 : index
    %c0_17 = arith.constant 0 : index
    %15 = vector.load %arg10[%c16, %c0_17] : memref<36x768xf32, #tpu.memory_space<vmem>>, vector<4x384xf32>
    tpu.vector_store %arg10[%c16, %c0_17], %14 {strides = array<i32>} : memref<36x768xf32, #tpu.memory_space<vmem>>, vector<4x384xf32>,
    %c0_18 = arith.constant 0 : index
    %c0_19 = arith.constant 0 : index
    %c26 = arith.constant 26 : index
    %16 = vector.load %arg1[%c0_18, %c0_19, %c26] : memref<2x4x456xf32, #tpu.memory_space<vmem>>, vector<1x4x384xf32>
    %17 = vector.shape_cast %16 : vector<1x4x384xf32> to vector<4x384xf32>
    %c20 = arith.constant 20 : index
    %c0_20 = arith.constant 0 : index
    %18 = vector.load %arg10[%c20, %c0_20] : memref<36x768xf32, #tpu.memory_space<vmem>>, vector<4x384xf32>
    tpu.vector_store %arg10[%c20, %c0_20], %17 {strides = array<i32>} : memref<36x768xf32, #tpu.memory_space<vmem>>, vector<4x384xf32>,
    %c0_21 = arith.constant 0 : index
    %c0_22 = arith.constant 0 : index
    %c48 = arith.constant 48 : index
    %19 = vector.load %arg1[%c0_21, %c0_22, %c48] : memref<2x4x456xf32, #tpu.memory_space<vmem>>, vector<1x4x384xf32>
    %20 = vector.shape_cast %19 : vector<1x4x384xf32> to vector<4x384xf32>
    %c24_23 = arith.constant 24 : index
    %c0_24 = arith.constant 0 : index
    %21 = vector.load %arg10[%c24_23, %c0_24] : memref<36x768xf32, #tpu.memory_space<vmem>>, vector<4x384xf32>
    tpu.vector_store %arg10[%c24_23, %c0_24], %20 {strides = array<i32>} : memref<36x768xf32, #tpu.memory_space<vmem>>, vector<4x384xf32>,
    %c0_25 = arith.constant 0 : index
    %c0_26 = arith.constant 0 : index
    %c49 = arith.constant 49 : index
    %22 = vector.load %arg1[%c0_25, %c0_26, %c49] : memref<2x4x456xf32, #tpu.memory_space<vmem>>, vector<1x4x384xf32>
    %23 = vector.shape_cast %22 : vector<1x4x384xf32> to vector<4x384xf32>
    %c28 = arith.constant 28 : index
    %c0_27 = arith.constant 0 : index
    %24 = vector.load %arg10[%c28, %c0_27] : memref<36x768xf32, #tpu.memory_space<vmem>>, vector<4x384xf32>
    tpu.vector_store %arg10[%c28, %c0_27], %23 {strides = array<i32>} : memref<36x768xf32, #tpu.memory_space<vmem>>, vector<4x384xf32>,
    %c0_28 = arith.constant 0 : index
    %c0_29 = arith.constant 0 : index
    %c50 = arith.constant 50 : index
    %25 = vector.load %arg1[%c0_28, %c0_29, %c50] : memref<2x4x456xf32, #tpu.memory_space<vmem>>, vector<1x4x384xf32>
    %26 = vector.shape_cast %25 : vector<1x4x384xf32> to vector<4x384xf32>
    %c32 = arith.constant 32 : index
    %c0_30 = arith.constant 0 : index
    %27 = vector.load %arg10[%c32, %c0_30] : memref<36x768xf32, #tpu.memory_space<vmem>>, vector<4x384xf32>
    tpu.vector_store %arg10[%c32, %c0_30], %26 {strides = array<i32>} : memref<36x768xf32, #tpu.memory_space<vmem>>, vector<4x384xf32>,
    %c1_31 = arith.constant 1 : index
    %c0_32 = arith.constant 0 : index
    %c0_33 = arith.constant 0 : index
    %28 = vector.load %arg1[%c1_31, %c0_32, %c0_33] : memref<2x4x456xf32, #tpu.memory_space<vmem>>, vector<1x4x384xf32>
    %29 = vector.shape_cast %28 : vector<1x4x384xf32> to vector<4x384xf32>
    %c0_34 = arith.constant 0 : index
    %c384 = arith.constant 384 : index
    %30 = vector.load %arg10[%c0_34, %c384] : memref<36x768xf32, #tpu.memory_space<vmem>>, vector<4x384xf32>
    tpu.vector_store %arg10[%c0_34, %c384], %29 {strides = array<i32>} : memref<36x768xf32, #tpu.memory_space<vmem>>, vector<4x384xf32>,
    %c1_35 = arith.constant 1 : index
    %c0_36 = arith.constant 0 : index
    %c1_37 = arith.constant 1 : index
    %31 = vector.load %arg1[%c1_35, %c0_36, %c1_37] : memref<2x4x456xf32, #tpu.memory_space<vmem>>, vector<1x4x384xf32>
    %32 = vector.shape_cast %31 : vector<1x4x384xf32> to vector<4x384xf32>
    %c4_38 = arith.constant 4 : index
    %c384_39 = arith.constant 384 : index
    %33 = vector.load %arg10[%c4_38, %c384_39] : memref<36x768xf32, #tpu.memory_space<vmem>>, vector<4x384xf32>
    tpu.vector_store %arg10[%c4_38, %c384_39], %32 {strides = array<i32>} : memref<36x768xf32, #tpu.memory_space<vmem>>, vector<4x384xf32>,
    %c1_40 = arith.constant 1 : index
    %c0_41 = arith.constant 0 : index
    %c2_42 = arith.constant 2 : index
    %34 = vector.load %arg1[%c1_40, %c0_41, %c2_42] : memref<2x4x456xf32, #tpu.memory_space<vmem>>, vector<1x4x384xf32>
    %35 = vector.shape_cast %34 : vector<1x4x384xf32> to vector<4x384xf32>
    %c8_43 = arith.constant 8 : index
    %c384_44 = arith.constant 384 : index
    %36 = vector.load %arg10[%c8_43, %c384_44] : memref<36x768xf32, #tpu.memory_space<vmem>>, vector<4x384xf32>
    tpu.vector_store %arg10[%c8_43, %c384_44], %35 {strides = array<i32>} : memref<36x768xf32, #tpu.memory_space<vmem>>, vector<4x384xf32>,
    %c1_45 = arith.constant 1 : index
    %c0_46 = arith.constant 0 : index
    %c24_47 = arith.constant 24 : index
    %37 = vector.load %arg1[%c1_45, %c0_46, %c24_47] : memref<2x4x456xf32, #tpu.memory_space<vmem>>, vector<1x4x384xf32>
    %38 = vector.shape_cast %37 : vector<1x4x384xf32> to vector<4x384xf32>
    %c12_48 = arith.constant 12 : index
    %c384_49 = arith.constant 384 : index
    %39 = vector.load %arg10[%c12_48, %c384_49] : memref<36x768xf32, #tpu.memory_space<vmem>>, vector<4x384xf32>
    tpu.vector_store %arg10[%c12_48, %c384_49], %38 {strides = array<i32>} : memref<36x768xf32, #tpu.memory_space<vmem>>, vector<4x384xf32>,
    %c1_50 = arith.constant 1 : index
    %c0_51 = arith.constant 0 : index
    %c25_52 = arith.constant 25 : index
    %40 = vector.load %arg1[%c1_50, %c0_51, %c25_52] : memref<2x4x456xf32, #tpu.memory_space<vmem>>, vector<1x4x384xf32>
    %41 = vector.shape_cast %40 : vector<1x4x384xf32> to vector<4x384xf32>
    %c16_53 = arith.constant 16 : index
    %c384_54 = arith.constant 384 : index
    %42 = vector.load %arg10[%c16_53, %c384_54] : memref<36x768xf32, #tpu.memory_space<vmem>>, vector<4x384xf32>
    tpu.vector_store %arg10[%c16_53, %c384_54], %41 {strides = array<i32>} : memref<36x768xf32, #tpu.memory_space<vmem>>, vector<4x384xf32>,
    %c1_55 = arith.constant 1 : index
    %c0_56 = arith.constant 0 : index
    %c26_57 = arith.constant 26 : index
    %43 = vector.load %arg1[%c1_55, %c0_56, %c26_57] : memref<2x4x456xf32, #tpu.memory_space<vmem>>, vector<1x4x384xf32>
    %44 = vector.shape_cast %43 : vector<1x4x384xf32> to vector<4x384xf32>
    %c20_58 = arith.constant 20 : index
    %c384_59 = arith.constant 384 : index
    %45 = vector.load %arg10[%c20_58, %c384_59] : memref<36x768xf32, #tpu.memory_space<vmem>>, vector<4x384xf32>
    tpu.vector_store %arg10[%c20_58, %c384_59], %44 {strides = array<i32>} : memref<36x768xf32, #tpu.memory_space<vmem>>, vector<4x384xf32>,
    %c1_60 = arith.constant 1 : index
    %c0_61 = arith.constant 0 : index
    %c48_62 = arith.constant 48 : index
    %46 = vector.load %arg1[%c1_60, %c0_61, %c48_62] : memref<2x4x456xf32, #tpu.memory_space<vmem>>, vector<1x4x384xf32>
    %47 = vector.shape_cast %46 : vector<1x4x384xf32> to vector<4x384xf32>
    %c24_63 = arith.constant 24 : index
    %c384_64 = arith.constant 384 : index
    %48 = vector.load %arg10[%c24_63, %c384_64] : memref<36x768xf32, #tpu.memory_space<vmem>>, vector<4x384xf32>
    tpu.vector_store %arg10[%c24_63, %c384_64], %47 {strides = array<i32>} : memref<36x768xf32, #tpu.memory_space<vmem>>, vector<4x384xf32>,
    %c1_65 = arith.constant 1 : index
    %c0_66 = arith.constant 0 : index
    %c49_67 = arith.constant 49 : index
    %49 = vector.load %arg1[%c1_65, %c0_66, %c49_67] : memref<2x4x456xf32, #tpu.memory_space<vmem>>, vector<1x4x384xf32>
    %50 = vector.shape_cast %49 : vector<1x4x384xf32> to vector<4x384xf32>
    %c28_68 = arith.constant 28 : index
    %c384_69 = arith.constant 384 : index
    %51 = vector.load %arg10[%c28_68, %c384_69] : memref<36x768xf32, #tpu.memory_space<vmem>>, vector<4x384xf32>
    tpu.vector_store %arg10[%c28_68, %c384_69], %50 {strides = array<i32>} : memref<36x768xf32, #tpu.memory_space<vmem>>, vector<4x384xf32>,
    %c1_70 = arith.constant 1 : index
    %c0_71 = arith.constant 0 : index
    %c50_72 = arith.constant 50 : index
    %52 = vector.load %arg1[%c1_70, %c0_71, %c50_72] : memref<2x4x456xf32, #tpu.memory_space<vmem>>, vector<1x4x384xf32>
    %53 = vector.shape_cast %52 : vector<1x4x384xf32> to vector<4x384xf32>
    %c32_73 = arith.constant 32 : index
    %c384_74 = arith.constant 384 : index
    %54 = vector.load %arg10[%c32_73, %c384_74] : memref<36x768xf32, #tpu.memory_space<vmem>>, vector<4x384xf32>
    tpu.vector_store %arg10[%c32_73, %c384_74], %53 {strides = array<i32>} : memref<36x768xf32, #tpu.memory_space<vmem>>, vector<4x384xf32>,
    %c0_75 = arith.constant 0 : index
    %c0_76 = arith.constant 0 : index
    %55 = vector.load %arg2[%c0_75, %c0_76] : memref<8x36xf32, #tpu.memory_space<vmem>>, vector<8x36xf32>
    %c0_77 = arith.constant 0 : index
    %c0_78 = arith.constant 0 : index
    %56 = vector.load %arg10[%c0_77, %c0_78] : memref<36x768xf32, #tpu.memory_space<vmem>>, vector<36x768xf32>
    %cst = arith.constant dense<0.000000e+00> : vector<8x768xf32>
    %57 = tpu.matmul %55, %56, %cst {dimension_numbers = #tpu.dot_dimension_numbers<[1], [0], [0], [1], [0, 0, 1, 1], [], []>} : vector<8x36xf32>, vector<36x768xf32>, vector<8x768xf32> -> vector<8x768xf32>
    %c0_79 = arith.constant 0 : index
    %c0_80 = arith.constant 0 : index
    %58 = vector.load %arg4[%c0_79, %c0_80] : memref<8x1xf32, #tpu.memory_space<vmem>>, vector<8x1xf32>
    %c0_81 = arith.constant 0 : index
    %c0_82 = arith.constant 0 : index
    %59 = vector.load %arg5[%c0_81, %c0_82] : memref<8x1xf32, #tpu.memory_space<vmem>>, vector<8x1xf32>
    %60 = vector.broadcast %0 : vector<1x768xf32> to vector<8x768xf32>
    %61 = arith.mulf %57, %60 : vector<8x768xf32>
    %cst_83 = arith.constant dense<0.000000e+00> : vector<8xf32>
    %62 = vector.multi_reduction <add>, %61, %cst_83 [1] : vector<8x768xf32> to vector<8xf32>
    %63 = vector.shape_cast %62 : vector<8xf32> to vector<8x1xf32>
    %cst_84 = arith.constant 5.120000e+02 : f32
    %64 = vector.broadcast %cst_84 : f32 to vector<8x1xf32>
    %65 = arith.divf %63, %64 : vector<8x1xf32>
    %66 = vector.broadcast %65 : vector<8x1xf32> to vector<8x768xf32>
    %67 = arith.subf %57, %66 : vector<8x768xf32>
    %68 = vector.broadcast %0 : vector<1x768xf32> to vector<8x768xf32>
    %69 = arith.mulf %67, %68 : vector<8x768xf32>
    %70 = arith.mulf %69, %69 : vector<8x768xf32>
    %cst_85 = arith.constant dense<0.000000e+00> : vector<8xf32>
    %71 = vector.multi_reduction <add>, %70, %cst_85 [1] : vector<8x768xf32> to vector<8xf32>
    %72 = vector.shape_cast %71 : vector<8xf32> to vector<8x1xf32>
    %cst_86 = arith.constant 5.120000e+02 : f32
    %73 = vector.broadcast %cst_86 : f32 to vector<8x1xf32>
    %74 = arith.divf %72, %73 : vector<8x1xf32>
    %cst_87 = arith.constant 9.99999974E-6 : f32
    %75 = vector.broadcast %cst_87 : f32 to vector<8x1xf32>
    %76 = arith.addf %74, %75 : vector<8x1xf32>
    %77 = math.rsqrt %76 : vector<8x1xf32>
    %78 = arith.mulf %58, %77 : vector<8x1xf32>
    %79 = arith.mulf %65, %78 : vector<8x1xf32>
    %80 = arith.subf %59, %79 : vector<8x1xf32>
    %81 = vector.broadcast %78 : vector<8x1xf32> to vector<8x768xf32>
    %82 = arith.mulf %57, %81 : vector<8x768xf32>
    %83 = vector.broadcast %80 : vector<8x1xf32> to vector<8x768xf32>
    %84 = arith.addf %82, %83 : vector<8x768xf32>
    %cst_88 = arith.constant 0.000000e+00 : f32
    %85 = vector.broadcast %cst_88 : f32 to vector<8x768xf32>
    %86 = arith.maximumf %84, %85 : vector<8x768xf32>
    %87 = vector.broadcast %0 : vector<1x768xf32> to vector<8x768xf32>
    %88 = arith.mulf %86, %87 : vector<8x768xf32>
    %cst_89 = arith.constant 0.000000e+00 : f32
    %89 = vector.broadcast %cst_89 : f32 to vector<8x456xf32>
    %c0_90 = arith.constant 0 : index
    %c0_91 = arith.constant 0 : index
    %90 = vector.load %arg12[%c0_90, %c0_91] : memref<8x456xf32, #tpu.memory_space<vmem>>, vector<8x456xf32>
    tpu.vector_store %arg12[%c0_90, %c0_91], %89 {strides = array<i32>} : memref<8x456xf32, #tpu.memory_space<vmem>>, vector<8x456xf32>,
    %91 = vector.extract_strided_slice %88 {offsets = [0, 0], sizes = [8, 384], strides = [1, 1]} : vector<8x768xf32> to vector<8x384xf32>
    %c0_92 = arith.constant 0 : index
    %c25_93 = arith.constant 25 : index
    %92 = vector.load %arg12[%c0_92, %c25_93] : memref<8x456xf32, #tpu.memory_space<vmem>>, vector<8x384xf32>
    tpu.vector_store %arg12[%c0_92, %c25_93], %91 {strides = array<i32>} : memref<8x456xf32, #tpu.memory_space<vmem>>, vector<8x384xf32>,
    %c0_94 = arith.constant 0 : index
    %c0_95 = arith.constant 0 : index
    %93 = vector.load %arg12[%c0_94, %c0_95] : memref<8x456xf32, #tpu.memory_space<vmem>>, vector<8x384xf32>
    %c0_96 = arith.constant 0 : index
    %c0_97 = arith.constant 0 : index
    %94 = vector.load %arg11[%c0_96, %c0_97] : memref<72x768xf32, #tpu.memory_space<vmem>>, vector<8x384xf32>
    tpu.vector_store %arg11[%c0_96, %c0_97], %93 {strides = array<i32>} : memref<72x768xf32, #tpu.memory_space<vmem>>, vector<8x384xf32>,
    %c0_98 = arith.constant 0 : index
    %c1_99 = arith.constant 1 : index
    %95 = vector.load %arg12[%c0_98, %c1_99] : memref<8x456xf32, #tpu.memory_space<vmem>>, vector<8x384xf32>
    %c8_100 = arith.constant 8 : index
    %c0_101 = arith.constant 0 : index
    %96 = vector.load %arg11[%c8_100, %c0_101] : memref<72x768xf32, #tpu.memory_space<vmem>>, vector<8x384xf32>
    tpu.vector_store %arg11[%c8_100, %c0_101], %95 {strides = array<i32>} : memref<72x768xf32, #tpu.memory_space<vmem>>, vector<8x384xf32>,
    %c0_102 = arith.constant 0 : index
    %c2_103 = arith.constant 2 : index
    %97 = vector.load %arg12[%c0_102, %c2_103] : memref<8x456xf32, #tpu.memory_space<vmem>>, vector<8x384xf32>
    %c16_104 = arith.constant 16 : index
    %c0_105 = arith.constant 0 : index
    %98 = vector.load %arg11[%c16_104, %c0_105] : memref<72x768xf32, #tpu.memory_space<vmem>>, vector<8x384xf32>
    tpu.vector_store %arg11[%c16_104, %c0_105], %97 {strides = array<i32>} : memref<72x768xf32, #tpu.memory_space<vmem>>, vector<8x384xf32>,
    %c0_106 = arith.constant 0 : index
    %c24_107 = arith.constant 24 : index
    %99 = vector.load %arg12[%c0_106, %c24_107] : memref<8x456xf32, #tpu.memory_space<vmem>>, vector<8x384xf32>
    %c24_108 = arith.constant 24 : index
    %c0_109 = arith.constant 0 : index
    %100 = vector.load %arg11[%c24_108, %c0_109] : memref<72x768xf32, #tpu.memory_space<vmem>>, vector<8x384xf32>
    tpu.vector_store %arg11[%c24_108, %c0_109], %99 {strides = array<i32>} : memref<72x768xf32, #tpu.memory_space<vmem>>, vector<8x384xf32>,
    %c0_110 = arith.constant 0 : index
    %c25_111 = arith.constant 25 : index
    %101 = vector.load %arg12[%c0_110, %c25_111] : memref<8x456xf32, #tpu.memory_space<vmem>>, vector<8x384xf32>
    %c32_112 = arith.constant 32 : index
    %c0_113 = arith.constant 0 : index
    %102 = vector.load %arg11[%c32_112, %c0_113] : memref<72x768xf32, #tpu.memory_space<vmem>>, vector<8x384xf32>
    tpu.vector_store %arg11[%c32_112, %c0_113], %101 {strides = array<i32>} : memref<72x768xf32, #tpu.memory_space<vmem>>, vector<8x384xf32>,
    %c0_114 = arith.constant 0 : index
    %c26_115 = arith.constant 26 : index
    %103 = vector.load %arg12[%c0_114, %c26_115] : memref<8x456xf32, #tpu.memory_space<vmem>>, vector<8x384xf32>
    %c40 = arith.constant 40 : index
    %c0_116 = arith.constant 0 : index
    %104 = vector.load %arg11[%c40, %c0_116] : memref<72x768xf32, #tpu.memory_space<vmem>>, vector<8x384xf32>
    tpu.vector_store %arg11[%c40, %c0_116], %103 {strides = array<i32>} : memref<72x768xf32, #tpu.memory_space<vmem>>, vector<8x384xf32>,
    %c0_117 = arith.constant 0 : index
    %c48_118 = arith.constant 48 : index
    %105 = vector.load %arg12[%c0_117, %c48_118] : memref<8x456xf32, #tpu.memory_space<vmem>>, vector<8x384xf32>
    %c48_119 = arith.constant 48 : index
    %c0_120 = arith.constant 0 : index
    %106 = vector.load %arg11[%c48_119, %c0_120] : memref<72x768xf32, #tpu.memory_space<vmem>>, vector<8x384xf32>
    tpu.vector_store %arg11[%c48_119, %c0_120], %105 {strides = array<i32>} : memref<72x768xf32, #tpu.memory_space<vmem>>, vector<8x384xf32>,
    %c0_121 = arith.constant 0 : index
    %c49_122 = arith.constant 49 : index
    %107 = vector.load %arg12[%c0_121, %c49_122] : memref<8x456xf32, #tpu.memory_space<vmem>>, vector<8x384xf32>
    %c56 = arith.constant 56 : index
    %c0_123 = arith.constant 0 : index
    %108 = vector.load %arg11[%c56, %c0_123] : memref<72x768xf32, #tpu.memory_space<vmem>>, vector<8x384xf32>
    tpu.vector_store %arg11[%c56, %c0_123], %107 {strides = array<i32>} : memref<72x768xf32, #tpu.memory_space<vmem>>, vector<8x384xf32>,
    %c0_124 = arith.constant 0 : index
    %c50_125 = arith.constant 50 : index
    %109 = vector.load %arg12[%c0_124, %c50_125] : memref<8x456xf32, #tpu.memory_space<vmem>>, vector<8x384xf32>
    %c64 = arith.constant 64 : index
    %c0_126 = arith.constant 0 : index
    %110 = vector.load %arg11[%c64, %c0_126] : memref<72x768xf32, #tpu.memory_space<vmem>>, vector<8x384xf32>
    tpu.vector_store %arg11[%c64, %c0_126], %109 {strides = array<i32>} : memref<72x768xf32, #tpu.memory_space<vmem>>, vector<8x384xf32>,
    %111 = vector.extract_strided_slice %88 {offsets = [0, 384], sizes = [8, 384], strides = [1, 1]} : vector<8x768xf32> to vector<8x384xf32>
    %c0_127 = arith.constant 0 : index
    %c25_128 = arith.constant 25 : index
    %112 = vector.load %arg12[%c0_127, %c25_128] : memref<8x456xf32, #tpu.memory_space<vmem>>, vector<8x384xf32>
    tpu.vector_store %arg12[%c0_127, %c25_128], %111 {strides = array<i32>} : memref<8x456xf32, #tpu.memory_space<vmem>>, vector<8x384xf32>,
    %c0_129 = arith.constant 0 : index
    %c0_130 = arith.constant 0 : index
    %113 = vector.load %arg12[%c0_129, %c0_130] : memref<8x456xf32, #tpu.memory_space<vmem>>, vector<8x384xf32>
    %c0_131 = arith.constant 0 : index
    %c384_132 = arith.constant 384 : index
    %114 = vector.load %arg11[%c0_131, %c384_132] : memref<72x768xf32, #tpu.memory_space<vmem>>, vector<8x384xf32>
    tpu.vector_store %arg11[%c0_131, %c384_132], %113 {strides = array<i32>} : memref<72x768xf32, #tpu.memory_space<vmem>>, vector<8x384xf32>,
    %c0_133 = arith.constant 0 : index
    %c1_134 = arith.constant 1 : index
    %115 = vector.load %arg12[%c0_133, %c1_134] : memref<8x456xf32, #tpu.memory_space<vmem>>, vector<8x384xf32>
    %c8_135 = arith.constant 8 : index
    %c384_136 = arith.constant 384 : index
    %116 = vector.load %arg11[%c8_135, %c384_136] : memref<72x768xf32, #tpu.memory_space<vmem>>, vector<8x384xf32>
    tpu.vector_store %arg11[%c8_135, %c384_136], %115 {strides = array<i32>} : memref<72x768xf32, #tpu.memory_space<vmem>>, vector<8x384xf32>,
    %c0_137 = arith.constant 0 : index
    %c2_138 = arith.constant 2 : index
    %117 = vector.load %arg12[%c0_137, %c2_138] : memref<8x456xf32, #tpu.memory_space<vmem>>, vector<8x384xf32>
    %c16_139 = arith.constant 16 : index
    %c384_140 = arith.constant 384 : index
    %118 = vector.load %arg11[%c16_139, %c384_140] : memref<72x768xf32, #tpu.memory_space<vmem>>, vector<8x384xf32>
    tpu.vector_store %arg11[%c16_139, %c384_140], %117 {strides = array<i32>} : memref<72x768xf32, #tpu.memory_space<vmem>>, vector<8x384xf32>,
    %c0_141 = arith.constant 0 : index
    %c24_142 = arith.constant 24 : index
    %119 = vector.load %arg12[%c0_141, %c24_142] : memref<8x456xf32, #tpu.memory_space<vmem>>, vector<8x384xf32>
    %c24_143 = arith.constant 24 : index
    %c384_144 = arith.constant 384 : index
    %120 = vector.load %arg11[%c24_143, %c384_144] : memref<72x768xf32, #tpu.memory_space<vmem>>, vector<8x384xf32>
    tpu.vector_store %arg11[%c24_143, %c384_144], %119 {strides = array<i32>} : memref<72x768xf32, #tpu.memory_space<vmem>>, vector<8x384xf32>,
    %c0_145 = arith.constant 0 : index
    %c25_146 = arith.constant 25 : index
    %121 = vector.load %arg12[%c0_145, %c25_146] : memref<8x456xf32, #tpu.memory_space<vmem>>, vector<8x384xf32>
    %c32_147 = arith.constant 32 : index
    %c384_148 = arith.constant 384 : index
    %122 = vector.load %arg11[%c32_147, %c384_148] : memref<72x768xf32, #tpu.memory_space<vmem>>, vector<8x384xf32>
    tpu.vector_store %arg11[%c32_147, %c384_148], %121 {strides = array<i32>} : memref<72x768xf32, #tpu.memory_space<vmem>>, vector<8x384xf32>,
    %c0_149 = arith.constant 0 : index
    %c26_150 = arith.constant 26 : index
    %123 = vector.load %arg12[%c0_149, %c26_150] : memref<8x456xf32, #tpu.memory_space<vmem>>, vector<8x384xf32>
    %c40_151 = arith.constant 40 : index
    %c384_152 = arith.constant 384 : index
    %124 = vector.load %arg11[%c40_151, %c384_152] : memref<72x768xf32, #tpu.memory_space<vmem>>, vector<8x384xf32>
    tpu.vector_store %arg11[%c40_151, %c384_152], %123 {strides = array<i32>} : memref<72x768xf32, #tpu.memory_space<vmem>>, vector<8x384xf32>,
    %c0_153 = arith.constant 0 : index
    %c48_154 = arith.constant 48 : index
    %125 = vector.load %arg12[%c0_153, %c48_154] : memref<8x456xf32, #tpu.memory_space<vmem>>, vector<8x384xf32>
    %c48_155 = arith.constant 48 : index
    %c384_156 = arith.constant 384 : index
    %126 = vector.load %arg11[%c48_155, %c384_156] : memref<72x768xf32, #tpu.memory_space<vmem>>, vector<8x384xf32>
    tpu.vector_store %arg11[%c48_155, %c384_156], %125 {strides = array<i32>} : memref<72x768xf32, #tpu.memory_space<vmem>>, vector<8x384xf32>,
    %c0_157 = arith.constant 0 : index
    %c49_158 = arith.constant 49 : index
    %127 = vector.load %arg12[%c0_157, %c49_158] : memref<8x456xf32, #tpu.memory_space<vmem>>, vector<8x384xf32>
    %c56_159 = arith.constant 56 : index
    %c384_160 = arith.constant 384 : index
    %128 = vector.load %arg11[%c56_159, %c384_160] : memref<72x768xf32, #tpu.memory_space<vmem>>, vector<8x384xf32>
    tpu.vector_store %arg11[%c56_159, %c384_160], %127 {strides = array<i32>} : memref<72x768xf32, #tpu.memory_space<vmem>>, vector<8x384xf32>,
    %c0_161 = arith.constant 0 : index
    %c50_162 = arith.constant 50 : index
    %129 = vector.load %arg12[%c0_161, %c50_162] : memref<8x456xf32, #tpu.memory_space<vmem>>, vector<8x384xf32>
    %c64_163 = arith.constant 64 : index
    %c384_164 = arith.constant 384 : index
    %130 = vector.load %arg11[%c64_163, %c384_164] : memref<72x768xf32, #tpu.memory_space<vmem>>, vector<8x384xf32>
    tpu.vector_store %arg11[%c64_163, %c384_164], %129 {strides = array<i32>} : memref<72x768xf32, #tpu.memory_space<vmem>>, vector<8x384xf32>,
    %c0_165 = arith.constant 0 : index
    %c0_166 = arith.constant 0 : index
    %131 = vector.load %arg3[%c0_165, %c0_166] : memref<8x72xf32, #tpu.memory_space<vmem>>, vector<8x72xf32>
    %c0_167 = arith.constant 0 : index
    %c0_168 = arith.constant 0 : index
    %132 = vector.load %arg11[%c0_167, %c0_168] : memref<72x768xf32, #tpu.memory_space<vmem>>, vector<72x768xf32>
    %cst_169 = arith.constant dense<0.000000e+00> : vector<8x768xf32>
    %133 = tpu.matmul %131, %132, %cst_169 {dimension_numbers = #tpu.dot_dimension_numbers<[1], [0], [0], [1], [0, 0, 1, 1], [], []>} : vector<8x72xf32>, vector<72x768xf32>, vector<8x768xf32> -> vector<8x768xf32>
    %c0_170 = arith.constant 0 : index
    %c0_171 = arith.constant 0 : index
    %134 = vector.load %arg6[%c0_170, %c0_171] : memref<8x1xf32, #tpu.memory_space<vmem>>, vector<8x1xf32>
    %c0_172 = arith.constant 0 : index
    %c0_173 = arith.constant 0 : index
    %135 = vector.load %arg7[%c0_172, %c0_173] : memref<8x1xf32, #tpu.memory_space<vmem>>, vector<8x1xf32>
    %136 = vector.broadcast %0 : vector<1x768xf32> to vector<8x768xf32>
    %137 = arith.mulf %133, %136 : vector<8x768xf32>
    %cst_174 = arith.constant dense<0.000000e+00> : vector<8xf32>
    %138 = vector.multi_reduction <add>, %137, %cst_174 [1] : vector<8x768xf32> to vector<8xf32>
    %139 = vector.shape_cast %138 : vector<8xf32> to vector<8x1xf32>
    %cst_175 = arith.constant 5.120000e+02 : f32
    %140 = vector.broadcast %cst_175 : f32 to vector<8x1xf32>
    %141 = arith.divf %139, %140 : vector<8x1xf32>
    %142 = vector.broadcast %141 : vector<8x1xf32> to vector<8x768xf32>
    %143 = arith.subf %133, %142 : vector<8x768xf32>
    %144 = vector.broadcast %0 : vector<1x768xf32> to vector<8x768xf32>
    %145 = arith.mulf %143, %144 : vector<8x768xf32>
    %146 = arith.mulf %145, %145 : vector<8x768xf32>
    %cst_176 = arith.constant dense<0.000000e+00> : vector<8xf32>
    %147 = vector.multi_reduction <add>, %146, %cst_176 [1] : vector<8x768xf32> to vector<8xf32>
    %148 = vector.shape_cast %147 : vector<8xf32> to vector<8x1xf32>
    %cst_177 = arith.constant 5.120000e+02 : f32
    %149 = vector.broadcast %cst_177 : f32 to vector<8x1xf32>
    %150 = arith.divf %148, %149 : vector<8x1xf32>
    %cst_178 = arith.constant 9.99999974E-6 : f32
    %151 = vector.broadcast %cst_178 : f32 to vector<8x1xf32>
    %152 = arith.addf %150, %151 : vector<8x1xf32>
    %153 = math.rsqrt %152 : vector<8x1xf32>
    %154 = arith.mulf %134, %153 : vector<8x1xf32>
    %155 = arith.mulf %141, %154 : vector<8x1xf32>
    %156 = arith.subf %135, %155 : vector<8x1xf32>
    %157 = vector.broadcast %154 : vector<8x1xf32> to vector<8x768xf32>
    %158 = arith.mulf %133, %157 : vector<8x768xf32>
    %159 = vector.broadcast %156 : vector<8x1xf32> to vector<8x768xf32>
    %160 = arith.addf %158, %159 : vector<8x768xf32>
    %cst_179 = arith.constant 0.000000e+00 : f32
    %161 = vector.broadcast %cst_179 : f32 to vector<8x768xf32>
    %162 = arith.maximumf %160, %161 : vector<8x768xf32>
    %163 = vector.broadcast %0 : vector<1x768xf32> to vector<8x768xf32>
    %164 = arith.mulf %162, %163 : vector<8x768xf32>
    %165 = vector.extract_strided_slice %164 {offsets = [0, 0], sizes = [8, 384], strides = [1, 1]} : vector<8x768xf32> to vector<8x384xf32>
    %c0_180 = arith.constant 0 : index
    %c0_181 = arith.constant 0 : index
    %c0_182 = arith.constant 0 : index
    %166 = vector.load %arg9[%c0_180, %c0_181, %c0_182] : memref<2x8x384xf32, #tpu.memory_space<vmem>>, vector<1x8x384xf32>
    %167 = vector.shape_cast %166 : vector<1x8x384xf32> to vector<8x384xf32>
    %168 = vector.shape_cast %165 : vector<8x384xf32> to vector<1x8x384xf32>
    tpu.vector_store %arg9[%c0_180, %c0_181, %c0_182], %168 {strides = array<i32>} : memref<2x8x384xf32, #tpu.memory_space<vmem>>, vector<1x8x384xf32>,
    %169 = vector.extract_strided_slice %164 {offsets = [0, 384], sizes = [8, 384], strides = [1, 1]} : vector<8x768xf32> to vector<8x384xf32>
    %c1_183 = arith.constant 1 : index
    %c0_184 = arith.constant 0 : index
    %c0_185 = arith.constant 0 : index
    %170 = vector.load %arg9[%c1_183, %c0_184, %c0_185] : memref<2x8x384xf32, #tpu.memory_space<vmem>>, vector<1x8x384xf32>
    %171 = vector.shape_cast %170 : vector<1x8x384xf32> to vector<8x384xf32>
    %172 = vector.shape_cast %169 : vector<8x384xf32> to vector<1x8x384xf32>
    tpu.vector_store %arg9[%c1_183, %c0_184, %c0_185], %172 {strides = array<i32>} : memref<2x8x384xf32, #tpu.memory_space<vmem>>, vector<1x8x384xf32>,
    return
  }
  func.func @transform_0(%arg0: i32) -> (i32, i32, i32) {
    %c0_i32 = arith.constant 0 : i32
    %c0_i32_0 = arith.constant 0 : i32
    %c0_i32_1 = arith.constant 0 : i32
    %c0_i32_2 = arith.constant 0 : i32
    return %c0_i32, %c0_i32_0, %c0_i32_1 : i32, i32, i32
  }
  func.func @transform_1(%arg0: i32) -> (i32, i32) {
    %c0_i32 = arith.constant 0 : i32
    %c0_i32_0 = arith.constant 0 : i32
    %c0_i32_1 = arith.constant 0 : i32
    return %c0_i32, %c0_i32_0 : i32, i32
  }
  func.func @transform_2(%arg0: i32) -> (i32, i32) {
    %c0_i32 = arith.constant 0 : i32
    %c0_i32_0 = arith.constant 0 : i32
    %c0_i32_1 = arith.constant 0 : i32
    return %c0_i32, %c0_i32_0 : i32, i32
  }
  func.func @transform_3(%arg0: i32) -> (i32, i32) {
    %c0_i32 = arith.constant 0 : i32
    %c0_i32_0 = arith.constant 0 : i32
    %c0_i32_1 = arith.constant 0 : i32
    return %c0_i32, %c0_i32_0 : i32, i32
  }
  func.func @transform_4(%arg0: i32) -> (i32, i32) {
    %c0_i32 = arith.constant 0 : i32
    %c0_i32_0 = arith.constant 0 : i32
    %c0_i32_1 = arith.constant 0 : i32
    return %c0_i32, %c0_i32_0 : i32, i32
  }
  func.func @transform_5(%arg0: i32) -> (i32, i32) {
    %c0_i32 = arith.constant 0 : i32
    %c0_i32_0 = arith.constant 0 : i32
    %c0_i32_1 = arith.constant 0 : i32
    return %c0_i32, %c0_i32_0 : i32, i32
  }
  func.func @transform_6(%arg0: i32) -> (i32, i32) {
    %c0_i32 = arith.constant 0 : i32
    %c0_i32_0 = arith.constant 0 : i32
    %c0_i32_1 = arith.constant 0 : i32
    return %c0_i32, %c0_i32_0 : i32, i32
  }
  func.func @transform_7(%arg0: i32) -> (i32, i32) {
    %c0_i32 = arith.constant 0 : i32
    %c0_i32_0 = arith.constant 0 : i32
    %c0_i32_1 = arith.constant 0 : i32
    return %c0_i32, %c0_i32_0 : i32, i32
  }
  func.func @transform_8(%arg0: i32) -> (i32, i32, i32) {
    %c0_i32 = arith.constant 0 : i32
    %c0_i32_0 = arith.constant 0 : i32
    %c0_i32_1 = arith.constant 0 : i32
    %c0_i32_2 = arith.constant 0 : i32
    return %c0_i32, %c0_i32_0, %c0_i32_1 : i32, i32, i32
  }
}

</mosaic_0001>

<llo_original>
// kernel: conv_block_forward.1
$region0: #{conv_block_forward.1}
  #allocation0 [shape = 'u32[]', space=smem, size = 0x4, offset = 0x4, fixed_abs, tag = 'smem constant byte address 0x4 - core index']
  #allocation1 [shape = 'u32[144,128]{1,0:T(1,128)}', space=vmem, size = 0x12000, scoped, tag = 'internal scratch']
  #allocation2 [shape = 'f32[36,768]{1,0:T(8,128)}', space=vmem, size = 0x1e000, scoped, tag = 'scratch operand']
  #allocation3 [shape = 'f32[72,768]{1,0:T(8,128)}', space=vmem, size = 0x36000, scoped, tag = 'scratch operand']
  #allocation4 [shape = 'f32[8,456]{1,0:T(8,128)}', space=vmem, size = 0x4000, scoped, tag = 'scratch operand']
  %s0 = inlined_call_operand.vmem [shape: f32[2,4,456], index: 0, kind: input, shape index: {}]
  %s1 = inlined_call_operand.vmem [shape: f32[8,36], index: 1, kind: input, shape index: {}]
  %s2 = inlined_call_operand.vmem [shape: f32[8,72], index: 2, kind: input, shape index: {}]
  %s3 = inlined_call_operand.vmem [shape: f32[8,1], index: 3, kind: input, shape index: {}]
  %s4 = inlined_call_operand.vmem [shape: f32[8,1], index: 4, kind: input, shape index: {}]
  %s5 = inlined_call_operand.vmem [shape: f32[8,1], index: 5, kind: input, shape index: {}]
  %s6 = inlined_call_operand.vmem [shape: f32[8,1], index: 6, kind: input, shape index: {}]
  %s7 = inlined_call_operand.vmem [shape: f32[1,768], index: 7, kind: input, shape index: {}]
  %s8 = inlined_call_operand.vmem [shape: f32[2,8,384], index: 8, kind: output, shape index: {}]
  %s9 = sld [smem:[#allocation0]]
  $region42: #{conv_block_forward.1} parent=0
    _
  %s11 = ssub.s32 1, %s9
  %s12 = scalar_select 0, %s11, %s9
  // Predicated region
  $region2: #{conv_block_forward.1} parent=0 // pred_check
    _
  $region3: #{conv_block_forward.1} parent=0 // pred_check_branch
    %14 = sbr.rel (0) target = $region5
  $region4: #{conv_block_forward.1} parent=0 // pred_region
    _
  $region5: #{conv_block_forward.1} parent=0 // pred_fallthru
    _
  // Predicated region
  $region6: #{conv_block_forward.1} parent=0 // pred_check
    _
  $region7: #{conv_block_forward.1} parent=0 // pred_check_branch
    %16 = sbr.rel (0) target = $region9
  $region8: #{conv_block_forward.1} parent=0 // pred_region
    _
  $region9: #{conv_block_forward.1} parent=0 // pred_fallthru
    _
  // Predicated region
  $region10: #{conv_block_forward.1} parent=0 // pred_check
    _
  $region11: #{conv_block_forward.1} parent=0 // pred_check_branch
    %18 = sbr.rel (0) target = $region13
  $region12: #{conv_block_forward.1} parent=0 // pred_region
    _
  $region13: #{conv_block_forward.1} parent=0 // pred_fallthru
    _
  // Predicated region
  $region14: #{conv_block_forward.1} parent=0 // pred_check
    _
  $region15: #{conv_block_forward.1} parent=0 // pred_check_branch
    %20 = sbr.rel (0) target = $region17
  $region16: #{conv_block_forward.1} parent=0 // pred_region
    _
  $region17: #{conv_block_forward.1} parent=0 // pred_fallthru
    _
  // Predicated region
  $region18: #{conv_block_forward.1} parent=0 // pred_check
    _
  $region19: #{conv_block_forward.1} parent=0 // pred_check_branch
    %22 = sbr.rel (0) target = $region21
  $region20: #{conv_block_forward.1} parent=0 // pred_region
    _
  $region21: #{conv_block_forward.1} parent=0 // pred_fallthru
    _
  // Predicated region
  $region22: #{conv_block_forward.1} parent=0 // pred_check
    _
  $region23: #{conv_block_forward.1} parent=0 // pred_check_branch
    %24 = sbr.rel (0) target = $region25
  $region24: #{conv_block_forward.1} parent=0 // pred_region
    _
  $region25: #{conv_block_forward.1} parent=0 // pred_fallthru
    _
  // Predicated region
  $region26: #{conv_block_forward.1} parent=0 // pred_check
    _
  $region27: #{conv_block_forward.1} parent=0 // pred_check_branch
    %26 = sbr.rel (0) target = $region29
  $region28: #{conv_block_forward.1} parent=0 // pred_region
    _
  $region29: #{conv_block_forward.1} parent=0 // pred_fallthru
    _
  // Predicated region
  $region30: #{conv_block_forward.1} parent=0 // pred_check
    _
  $region31: #{conv_block_forward.1} parent=0 // pred_check_branch
    %28 = sbr.rel (0) target = $region33
  $region32: #{conv_block_forward.1} parent=0 // pred_region
    _
  $region33: #{conv_block_forward.1} parent=0 // pred_fallthru
    _
  %v29 = vld [vmem:[%s7] sm:$0x3f]
  %v30 = vld [vmem:[%s0] sm:$0xff]
  %v31 = vld [vmem:[%s0 + $0x8] sm:$0xf]
  %v33 = vcombine.high %v30, %v30
  %35 = vst [vmem:[#allocation2] sm:$0xf] %v30
  %36 = vst [vmem:[#allocation2 + $0x8] sm:$0xf] %v33
  %37 = vst [vmem:[#allocation2 + $0x10] sm:$0xf] %v31
  %v38 = vld [vmem:[%s0] sm:$0xff]
  %v39 = vld [vmem:[%s0 + $0x8] sm:$0xff]
  %v42 = vcombine.low %v38, %v38
  %v43 = vcombine.low %v39, %v39
  %44 = vrot.lane.b32.xlu0 %v42, 127
  %v45 = vpop.permute.xlu0 %44
  %46 = vrot.lane.b32.xlu0 %v38, 127
  %v47 = vpop.permute.xlu0 %46
  %48 = vrot.lane.b32.xlu0 %v43, 127
  %v49 = vpop.permute.xlu0 %48
  %50 = vrot.lane.b32.xlu0 %v39, 127
  %v51 = vpop.permute.xlu0 %50
  %vm52 = vcmask 1039360
  %v53 = vsel %vm52, %v45, %v47
  %v54 = vsel %vm52, %v47, %v49
  %v55 = vsel %vm52, %v49, %v51
  %59 = vst [vmem:[#allocation2] sm:$0xf0] %v53
  %60 = vst [vmem:[#allocation2 + $0x8] sm:$0xf0] %v54
  %61 = vst [vmem:[#allocation2 + $0x10] sm:$0xf0] %v55
  %v62 = vld [vmem:[%s0] sm:$0xff]
  %v63 = vld [vmem:[%s0 + $0x8] sm:$0xff]
  %v66 = vcombine.high %v62, %v62
  %v67 = vcombine.high %v63, %v63
  %68 = vrot.lane.b32.xlu0 %v62, 126
  %v69 = vpop.permute.xlu0 %68
  %70 = vrot.lane.b32.xlu0 %v66, 126
  %v71 = vpop.permute.xlu0 %70
  %72 = vrot.lane.b32.xlu0 %v63, 126
  %v73 = vpop.permute.xlu0 %72
  %74 = vrot.lane.b32.xlu0 %v67, 126
  %v75 = vpop.permute.xlu0 %74
  %vm76 = vcmask 1031168
  %v77 = vsel %vm76, %v69, %v71
  %v78 = vsel %vm76, %v71, %v73
  %v79 = vsel %vm76, %v73, %v75
  %83 = vst [vmem:[#allocation2 + $0x30] sm:$0xf] %v77
  %84 = vst [vmem:[#allocation2 + $0x38] sm:$0xf] %v78
  %85 = vst [vmem:[#allocation2 + $0x40] sm:$0xf] %v79
  %v86 = vld [vmem:[%s0] sm:$0xff]
  %v87 = vld [vmem:[%s0 + $0x8] sm:$0xff]
  %v90 = vcombine.low %v86, %v86
  %v91 = vcombine.low %v87, %v87
  %92 = vrot.lane.b32.xlu0 %v90, 104
  %v93 = vpop.permute.xlu0 %92
  %94 = vrot.lane.b32.xlu0 %v86, 104
  %v95 = vpop.permute.xlu0 %94
  %96 = vrot.lane.b32.xlu0 %v91, 104
  %v97 = vpop.permute.xlu0 %96
  %98 = vrot.lane.b32.xlu0 %v87, 104
  %v99 = vpop.permute.xlu0 %98
  %vm100 = vcmask 850944
  %v101 = vsel %vm100, %v93, %v95
  %v102 = vsel %vm100, %v95, %v97
  %v103 = vsel %vm100, %v97, %v99
  %107 = vst [vmem:[#allocation2 + $0x30] sm:$0xf0] %v101
  %108 = vst [vmem:[#allocation2 + $0x38] sm:$0xf0] %v102
  %109 = vst [vmem:[#allocation2 + $0x40] sm:$0xf0] %v103
  %v110 = vld [vmem:[%s0] sm:$0xff]
  %v111 = vld [vmem:[%s0 + $0x8] sm:$0xff]
  %v114 = vcombine.high %v110, %v110
  %v115 = vcombine.high %v111, %v111
  %116 = vrot.lane.b32.xlu0 %v110, 103
  %v117 = vpop.permute.xlu0 %116
  %118 = vrot.lane.b32.xlu0 %v114, 103
  %v119 = vpop.permute.xlu0 %118
  %120 = vrot.lane.b32.xlu0 %v111, 103
  %v121 = vpop.permute.xlu0 %120
  %122 = vrot.lane.b32.xlu0 %v115, 103
  %v123 = vpop.permute.xlu0 %122
  %vm124 = vcmask 842752
  %v125 = vsel %vm124, %v117, %v119
  %v126 = vsel %vm124, %v119, %v121
  %v127 = vsel %vm124, %v121, %v123
  %131 = vst [vmem:[#allocation2 + $0x60] sm:$0xf] %v125
  %132 = vst [vmem:[#allocation2 + $0x68] sm:$0xf] %v126
  %133 = vst [vmem:[#allocation2 + $0x70] sm:$0xf] %v127
  %v134 = vld [vmem:[%s0] sm:$0xff]
  %v135 = vld [vmem:[%s0 + $0x8] sm:$0xff]
  %v138 = vcombine.low %v134, %v134
  %v139 = vcombine.low %v135, %v135
  %140 = vrot.lane.b32.xlu0 %v138, 102
  %v141 = vpop.permute.xlu0 %140
  %142 = vrot.lane.b32.xlu0 %v134, 102
  %v143 = vpop.permute.xlu0 %142
  %144 = vrot.lane.b32.xlu0 %v139, 102
  %v145 = vpop.permute.xlu0 %144
  %146 = vrot.lane.b32.xlu0 %v135, 102
  %v147 = vpop.permute.xlu0 %146
  %vm148 = vcmask 834560
  %v149 = vsel %vm148, %v141, %v143
  %v150 = vsel %vm148, %v143, %v145
  %v151 = vsel %vm148, %v145, %v147
  %155 = vst [vmem:[#allocation2 + $0x60] sm:$0xf0] %v149
  %156 = vst [vmem:[#allocation2 + $0x68] sm:$0xf0] %v150
  %157 = vst [vmem:[#allocation2 + $0x70] sm:$0xf0] %v151
  %v158 = vld [vmem:[%s0] sm:$0xff]
  %v159 = vld [vmem:[%s0 + $0x8] sm:$0xff]
  %v162 = vcombine.high %v158, %v158
  %v163 = vcombine.high %v159, %v159
  %164 = vrot.lane.b32.xlu0 %v158, 80
  %v165 = vpop.permute.xlu0 %164
  %166 = vrot.lane.b32.xlu0 %v162, 80
  %v167 = vpop.permute.xlu0 %166
  %168 = vrot.lane.b32.xlu0 %v159, 80
  %v169 = vpop.permute.xlu0 %168
  %170 = vrot.lane.b32.xlu0 %v163, 80
  %v171 = vpop.permute.xlu0 %170
  %vm172 = vcmask 654336
  %v173 = vsel %vm172, %v165, %v167
  %v174 = vsel %vm172, %v167, %v169
  %v175 = vsel %vm172, %v169, %v171
  %179 = vst [vmem:[#allocation2 + $0x90] sm:$0xf] %v173
  %180 = vst [vmem:[#allocation2 + $0x98] sm:$0xf] %v174
  %181 = vst [vmem:[#allocation2 + $0xa0] sm:$0xf] %v175
  %v182 = vld [vmem:[%s0] sm:$0xff]
  %v183 = vld [vmem:[%s0 + $0x8] sm:$0xff]
  %v186 = vcombine.low %v182, %v182
  %v187 = vcombine.low %v183, %v183
  %188 = vrot.lane.b32.xlu0 %v186, 79
  %v189 = vpop.permute.xlu0 %188
  %190 = vrot.lane.b32.xlu0 %v182, 79
  %v191 = vpop.permute.xlu0 %190
  %192 = vrot.lane.b32.xlu0 %v187, 79
  %v193 = vpop.permute.xlu0 %192
  %194 = vrot.lane.b32.xlu0 %v183, 79
  %v195 = vpop.permute.xlu0 %194
  %vm196 = vcmask 646144
  %v197 = vsel %vm196, %v189, %v191
  %v198 = vsel %vm196, %v191, %v193
  %v199 = vsel %vm196, %v193, %v195
  %203 = vst [vmem:[#allocation2 + $0x90] sm:$0xf0] %v197
  %204 = vst [vmem:[#allocation2 + $0x98] sm:$0xf0] %v198
  %205 = vst [vmem:[#allocation2 + $0xa0] sm:$0xf0] %v199
  %v206 = vld [vmem:[%s0] sm:$0xff]
  %v207 = vld [vmem:[%s0 + $0x8] sm:$0xff]
  %v210 = vcombine.high %v206, %v206
  %v211 = vcombine.high %v207, %v207
  %212 = vrot.lane.b32.xlu0 %v206, 78
  %v213 = vpop.permute.xlu0 %212
  %214 = vrot.lane.b32.xlu0 %v210, 78
  %v215 = vpop.permute.xlu0 %214
  %216 = vrot.lane.b32.xlu0 %v207, 78
  %v217 = vpop.permute.xlu0 %216
  %218 = vrot.lane.b32.xlu0 %v211, 78
  %v219 = vpop.permute.xlu0 %218
  %vm220 = vcmask 637952
  %v221 = vsel %vm220, %v213, %v215
  %v222 = vsel %vm220, %v215, %v217
  %v223 = vsel %vm220, %v217, %v219
  %227 = vst [vmem:[#allocation2 + $0xc0] sm:$0xf] %v221
  %228 = vst [vmem:[#allocation2 + $0xc8] sm:$0xf] %v222
  %229 = vst [vmem:[#allocation2 + $0xd0] sm:$0xf] %v223
  %s230 = scalar_lea.vmem %s0, 16
  %v231 = vld [vmem:[%s230] sm:$0xff]
  %v232 = vld [vmem:[%s230 + $0x8] sm:$0xf]
  %v234 = vcombine.high %v231, %v231
  %236 = vst [vmem:[#allocation2 + $0x18] sm:$0xf] %v231
  %237 = vst [vmem:[#allocation2 + $0x20] sm:$0xf] %v234
  %238 = vst [vmem:[#allocation2 + $0x28] sm:$0xf] %v232
  %v239 = vld [vmem:[%s230] sm:$0xff]
  %v240 = vld [vmem:[%s230 + $0x8] sm:$0xff]
  %v243 = vcombine.low %v239, %v239
  %v244 = vcombine.low %v240, %v240
  %245 = vrot.lane.b32.xlu0 %v243, 127
  %v246 = vpop.permute.xlu0 %245
  %247 = vrot.lane.b32.xlu0 %v239, 127
  %v248 = vpop.permute.xlu0 %247
  %249 = vrot.lane.b32.xlu0 %v244, 127
  %v250 = vpop.permute.xlu0 %249
  %251 = vrot.lane.b32.xlu0 %v240, 127
  %v252 = vpop.permute.xlu0 %251
  %v253 = vsel %vm52, %v246, %v248
  %v254 = vsel %vm52, %v248, %v250
  %v255 = vsel %vm52, %v250, %v252
  %259 = vst [vmem:[#allocation2 + $0x18] sm:$0xf0] %v253
  %260 = vst [vmem:[#allocation2 + $0x20] sm:$0xf0] %v254
  %261 = vst [vmem:[#allocation2 + $0x28] sm:$0xf0] %v255
  %v262 = vld [vmem:[%s230] sm:$0xff]
  %v263 = vld [vmem:[%s230 + $0x8] sm:$0xff]
  %v266 = vcombine.high %v262, %v262
  %v267 = vcombine.high %v263, %v263
  %268 = vrot.lane.b32.xlu0 %v262, 126
  %v269 = vpop.permute.xlu0 %268
  %270 = vrot.lane.b32.xlu0 %v266, 126
  %v271 = vpop.permute.xlu0 %270
  %272 = vrot.lane.b32.xlu0 %v263, 126
  %v273 = vpop.permute.xlu0 %272
  %274 = vrot.lane.b32.xlu0 %v267, 126
  %v275 = vpop.permute.xlu0 %274
  %v276 = vsel %vm76, %v269, %v271
  %v277 = vsel %vm76, %v271, %v273
  %v278 = vsel %vm76, %v273, %v275
  %282 = vst [vmem:[#allocation2 + $0x48] sm:$0xf] %v276
  %283 = vst [vmem:[#allocation2 + $0x50] sm:$0xf] %v277
  %284 = vst [vmem:[#allocation2 + $0x58] sm:$0xf] %v278
  %v285 = vld [vmem:[%s230] sm:$0xff]
  %v286 = vld [vmem:[%s230 + $0x8] sm:$0xff]
  %v289 = vcombine.low %v285, %v285
  %v290 = vcombine.low %v286, %v286
  %291 = vrot.lane.b32.xlu0 %v289, 104
  %v292 = vpop.permute.xlu0 %291
  %293 = vrot.lane.b32.xlu0 %v285, 104
  %v294 = vpop.permute.xlu0 %293
  %295 = vrot.lane.b32.xlu0 %v290, 104
  %v296 = vpop.permute.xlu0 %295
  %297 = vrot.lane.b32.xlu0 %v286, 104
  %v298 = vpop.permute.xlu0 %297
  %v299 = vsel %vm100, %v292, %v294
  %v300 = vsel %vm100, %v294, %v296
  %v301 = vsel %vm100, %v296, %v298
  %305 = vst [vmem:[#allocation2 + $0x48] sm:$0xf0] %v299
  %306 = vst [vmem:[#allocation2 + $0x50] sm:$0xf0] %v300
  %307 = vst [vmem:[#allocation2 + $0x58] sm:$0xf0] %v301
  %v308 = vld [vmem:[%s230] sm:$0xff]
  %v309 = vld [vmem:[%s230 + $0x8] sm:$0xff]
  %v312 = vcombine.high %v308, %v308
  %v313 = vcombine.high %v309, %v309
  %314 = vrot.lane.b32.xlu0 %v308, 103
  %v315 = vpop.permute.xlu0 %314
  %316 = vrot.lane.b32.xlu0 %v312, 103
  %v317 = vpop.permute.xlu0 %316
  %318 = vrot.lane.b32.xlu0 %v309, 103
  %v319 = vpop.permute.xlu0 %318
  %320 = vrot.lane.b32.xlu0 %v313, 103
  %v321 = vpop.permute.xlu0 %320
  %v322 = vsel %vm124, %v315, %v317
  %v323 = vsel %vm124, %v317, %v319
  %v324 = vsel %vm124, %v319, %v321
  %328 = vst [vmem:[#allocation2 + $0x78] sm:$0xf] %v322
  %329 = vst [vmem:[#allocation2 + $0x80] sm:$0xf] %v323
  %330 = vst [vmem:[#allocation2 + $0x88] sm:$0xf] %v324
  %v331 = vld [vmem:[%s230] sm:$0xff]
  %v332 = vld [vmem:[%s230 + $0x8] sm:$0xff]
  %v335 = vcombine.low %v331, %v331
  %v336 = vcombine.low %v332, %v332
  %337 = vrot.lane.b32.xlu0 %v335, 102
  %v338 = vpop.permute.xlu0 %337
  %339 = vrot.lane.b32.xlu0 %v331, 102
  %v340 = vpop.permute.xlu0 %339
  %341 = vrot.lane.b32.xlu0 %v336, 102
  %v342 = vpop.permute.xlu0 %341
  %343 = vrot.lane.b32.xlu0 %v332, 102
  %v344 = vpop.permute.xlu0 %343
  %v345 = vsel %vm148, %v338, %v340
  %v346 = vsel %vm148, %v340, %v342
  %v347 = vsel %vm148, %v342, %v344
  %351 = vst [vmem:[#allocation2 + $0x78] sm:$0xf0] %v345
  %352 = vst [vmem:[#allocation2 + $0x80] sm:$0xf0] %v346
  %353 = vst [vmem:[#allocation2 + $0x88] sm:$0xf0] %v347
  %v354 = vld [vmem:[%s230] sm:$0xff]
  %v355 = vld [vmem:[%s230 + $0x8] sm:$0xff]
  %v358 = vcombine.high %v354, %v354
  %v359 = vcombine.high %v355, %v355
  %360 = vrot.lane.b32.xlu0 %v354, 80
  %v361 = vpop.permute.xlu0 %360
  %362 = vrot.lane.b32.xlu0 %v358, 80
  %v363 = vpop.permute.xlu0 %362
  %364 = vrot.lane.b32.xlu0 %v355, 80
  %v365 = vpop.permute.xlu0 %364
  %366 = vrot.lane.b32.xlu0 %v359, 80
  %v367 = vpop.permute.xlu0 %366
  %v368 = vsel %vm172, %v361, %v363
  %v369 = vsel %vm172, %v363, %v365
  %v370 = vsel %vm172, %v365, %v367
  %374 = vst [vmem:[#allocation2 + $0xa8] sm:$0xf] %v368
  %375 = vst [vmem:[#allocation2 + $0xb0] sm:$0xf] %v369
  %376 = vst [vmem:[#allocation2 + $0xb8] sm:$0xf] %v370
  %v377 = vld [vmem:[%s230] sm:$0xff]
  %v378 = vld [vmem:[%s230 + $0x8] sm:$0xff]
  %v381 = vcombine.low %v377, %v377
  %v382 = vcombine.low %v378, %v378
  %383 = vrot.lane.b32.xlu0 %v381, 79
  %v384 = vpop.permute.xlu0 %383
  %385 = vrot.lane.b32.xlu0 %v377, 79
  %v386 = vpop.permute.xlu0 %385
  %387 = vrot.lane.b32.xlu0 %v382, 79
  %v388 = vpop.permute.xlu0 %387
  %389 = vrot.lane.b32.xlu0 %v378, 79
  %v390 = vpop.permute.xlu0 %389
  %v391 = vsel %vm196, %v384, %v386
  %v392 = vsel %vm196, %v386, %v388
  %v393 = vsel %vm196, %v388, %v390
  %397 = vst [vmem:[#allocation2 + $0xa8] sm:$0xf0] %v391
  %398 = vst [vmem:[#allocation2 + $0xb0] sm:$0xf0] %v392
  %399 = vst [vmem:[#allocation2 + $0xb8] sm:$0xf0] %v393
  %v400 = vld [vmem:[%s230] sm:$0xff]
  %v401 = vld [vmem:[%s230 + $0x8] sm:$0xff]
  %v404 = vcombine.high %v400, %v400
  %v405 = vcombine.high %v401, %v401
  %406 = vrot.lane.b32.xlu0 %v400, 78
  %v407 = vpop.permute.xlu0 %406
  %408 = vrot.lane.b32.xlu0 %v404, 78
  %v409 = vpop.permute.xlu0 %408
  %410 = vrot.lane.b32.xlu0 %v401, 78
  %v411 = vpop.permute.xlu0 %410
  %412 = vrot.lane.b32.xlu0 %v405, 78
  %v413 = vpop.permute.xlu0 %412
  %v414 = vsel %vm220, %v407, %v409
  %v415 = vsel %vm220, %v409, %v411
  %v416 = vsel %vm220, %v411, %v413
  %420 = vst [vmem:[#allocation2 + $0xd8] sm:$0xf] %v414
  %421 = vst [vmem:[#allocation2 + $0xe0] sm:$0xf] %v415
  %422 = vst [vmem:[#allocation2 + $0xe8] sm:$0xf] %v416
  %v423 = vld [vmem:[%s1] sm:$0xff]
  %v424 = vld [vmem:[#allocation2] sm:$0xff]
  %v425 = vld [vmem:[#allocation2 + $0x8] sm:$0xff]
  %v426 = vld [vmem:[#allocation2 + $0x10] sm:$0xff]
  %v427 = vld [vmem:[#allocation2 + $0x18] sm:$0xff]
  %v428 = vld [vmem:[#allocation2 + $0x20] sm:$0xff]
  %v429 = vld [vmem:[#allocation2 + $0x28] sm:$0xff]
  %v430 = vld [vmem:[#allocation2 + $0x30] sm:$0xff]
  %v431 = vld [vmem:[#allocation2 + $0x38] sm:$0xff]
  %v432 = vld [vmem:[#allocation2 + $0x40] sm:$0xff]
  %v433 = vld [vmem:[#allocation2 + $0x48] sm:$0xff]
  %v434 = vld [vmem:[#allocation2 + $0x50] sm:$0xff]
  %v435 = vld [vmem:[#allocation2 + $0x58] sm:$0xff]
  %v436 = vld [vmem:[#allocation2 + $0x60] sm:$0xff]
  %v437 = vld [vmem:[#allocation2 + $0x68] sm:$0xff]
  %v438 = vld [vmem:[#allocation2 + $0x70] sm:$0xff]
  %v439 = vld [vmem:[#allocation2 + $0x78] sm:$0xff]
  %v440 = vld [vmem:[#allocation2 + $0x80] sm:$0xff]
  %v441 = vld [vmem:[#allocation2 + $0x88] sm:$0xff]
  %v442 = vld [vmem:[#allocation2 + $0x90] sm:$0xff]
  %v443 = vld [vmem:[#allocation2 + $0x98] sm:$0xff]
  %v444 = vld [vmem:[#allocation2 + $0xa0] sm:$0xff]
  %v445 = vld [vmem:[#allocation2 + $0xa8] sm:$0xff]
  %v446 = vld [vmem:[#allocation2 + $0xb0] sm:$0xff]
  %v447 = vld [vmem:[#allocation2 + $0xb8] sm:$0xff]
  %v448 = vld [vmem:[#allocation2 + $0xc0] sm:$0xf]
  %v449 = vld [vmem:[#allocation2 + $0xc8] sm:$0xf]
  %v450 = vld [vmem:[#allocation2 + $0xd0] sm:$0xf]
  %v451 = vld [vmem:[#allocation2 + $0xd8] sm:$0xf]
  %v452 = vld [vmem:[#allocation2 + $0xe0] sm:$0xf]
  %v453 = vld [vmem:[#allocation2 + $0xe8] sm:$0xf]
  %vm454 = vcmask 293888
  %v456 = vsel %vm454, %v423, 0
  %vm458 = vcmask 1043456
  %v460 = vsel %vm458, %v448, 0
  %v463 = vsel %vm458, %v449, 0
  %v466 = vsel %vm458, %v450, 0
  %v469 = vsel %vm458, %v451, 0
  %v472 = vsel %vm458, %v452, 0
  %v475 = vsel %vm458, %v453, 0
  %477 = vmatprep.subr.mxu0 0.0
  %478 = vmatpush1.msra.mxu0 0.0
  %479 = vmatprep.subr.mxu0 0.0
  %480 = vmatpush1.msra.mxu0 0.0
  %481 = vmatprep.subr.mxu0 0.0
  %482 = vmatpush1.msra.mxu0 0.0
  %483 = vmatprep.subr.mxu0 0.0
  %484 = vmatpush1.msra.mxu0 0.0
  %485 = vmatprep.subr.mxu0 0.0
  %486 = vmatpush1.msra.mxu0 0.0
  %487 = vmatprep.subr.mxu0 0.0
  %488 = vmatpush1.msra.mxu0 0.0
  %489 = vmatprep.subr.mxu0 0.0
  %490 = vmatpush1.msra.mxu0 0.0
  %491 = vmatprep.subr.mxu0 0.0
  %492 = vmatpush1.msra.mxu0 0.0
  %493 = vmatprep.subr.mxu0 0.0
  %494 = vmatpush1.msra.mxu0 0.0
  %495 = vmatprep.subr.mxu0 0.0
  %496 = vmatpush1.msra.mxu0 0.0
  %497 = vmatprep.subr.mxu0 0.0
  %498 = vmatpush1.msra.mxu0 0.0
  %499 = vmatprep.subr.mxu0 %v463
  %500 = vmatpush1.msra.mxu0 %v460
  %501 = vmatprep.subr.mxu0 %v443
  %502 = vmatpush1.msra.mxu0 %v442
  %503 = vmatprep.subr.mxu0 %v437
  %504 = vmatpush1.msra.mxu0 %v436
  %505 = vmatprep.subr.mxu0 %v431
  %506 = vmatpush1.msra.mxu0 %v430
  %507 = vmatprep.subr.mxu0 %v425
  %508 = vmatpush1.msra.mxu0 %v424
  %509 = vmatprep.subr.mxu0 0.0
  %510 = vmatpush2.msra.mxu0 0.0
  %511 = vmatprep.subr.mxu0 0.0
  %512 = vmatpush2.msra.mxu0 0.0
  %513 = vmatprep.subr.mxu0 0.0
  %514 = vmatpush2.msra.mxu0 0.0
  %515 = vmatprep.subr.mxu0 0.0
  %516 = vmatpush2.msra.mxu0 0.0
  %517 = vmatprep.subr.mxu0 0.0
  %518 = vmatpush2.msra.mxu0 0.0
  %519 = vmatprep.subr.mxu0 0.0
  %520 = vmatpush2.msra.mxu0 0.0
  %521 = vmatprep.subr.mxu0 0.0
  %522 = vmatpush2.msra.mxu0 0.0
  %523 = vmatprep.subr.mxu0 0.0
  %524 = vmatpush2.msra.mxu0 0.0
  %525 = vmatprep.subr.mxu0 0.0
  %526 = vmatpush2.msra.mxu0 0.0
  %527 = vmatprep.subr.mxu0 0.0
  %528 = vmatpush2.msra.mxu0 0.0
  %529 = vmatprep.subr.mxu0 0.0
  %530 = vmatpush2.msra.mxu0 0.0
  %531 = vmatprep.subr.mxu0 0.0
  %532 = vmatpush2.msra.mxu0 0.0
  %533 = vmatprep.subr.mxu0 0.0
  %534 = vmatpush2.msra.mxu0 0.0
  %535 = vmatprep.subr.mxu0 0.0
  %536 = vmatpush2.msra.mxu0 0.0
  %537 = vmatprep.subr.mxu0 0.0
  %538 = vmatpush2.msra.mxu0 0.0
  %539 = vmatprep.subr.mxu0 0.0
  %540 = vmatpush2.msra.mxu0 0.0
  %541 = vmatprep.mubr.f32.mxu0 0.0
  %542 = vmatmul.mubr.f32.gmra.mxu0 %v456
  %v543 = vpop.f32.mrf.mxu0
  %v544 = vadd.f32 0.0, %v543
  %v545 = vpop.f32.mrf.mxu0
  %v546 = vadd.f32 0.0, %v545
  %547 = vdwg.mxu0
  %548 = vmatprep.subr.mxu0 0.0
  %549 = vmatpush1.msra.mxu0 0.0
  %550 = vmatprep.subr.mxu0 0.0
  %551 = vmatpush1.msra.mxu0 0.0
  %552 = vmatprep.subr.mxu0 0.0
  %553 = vmatpush1.msra.mxu0 0.0
  %554 = vmatprep.subr.mxu0 0.0
  %555 = vmatpush1.msra.mxu0 0.0
  %556 = vmatprep.subr.mxu0 0.0
  %557 = vmatpush1.msra.mxu0 0.0
  %558 = vmatprep.subr.mxu0 0.0
  %559 = vmatpush1.msra.mxu0 0.0
  %560 = vmatprep.subr.mxu0 0.0
  %561 = vmatpush1.msra.mxu0 0.0
  %562 = vmatprep.subr.mxu0 0.0
  %563 = vmatpush1.msra.mxu0 0.0
  %564 = vmatprep.subr.mxu0 0.0
  %565 = vmatpush1.msra.mxu0 0.0
  %566 = vmatprep.subr.mxu0 0.0
  %567 = vmatpush1.msra.mxu0 0.0
  %568 = vmatprep.subr.mxu0 0.0
  %569 = vmatpush1.msra.mxu0 0.0
  %570 = vmatprep.subr.mxu0 %v469
  %571 = vmatpush1.msra.mxu0 %v466
  %572 = vmatprep.subr.mxu0 %v445
  %573 = vmatpush1.msra.mxu0 %v444
  %574 = vmatprep.subr.mxu0 %v439
  %575 = vmatpush1.msra.mxu0 %v438
  %576 = vmatprep.subr.mxu0 %v433
  %577 = vmatpush1.msra.mxu0 %v432
  %578 = vmatprep.subr.mxu0 %v427
  %579 = vmatpush1.msra.mxu0 %v426
  %580 = vmatprep.subr.mxu0 0.0
  %581 = vmatpush2.msra.mxu0 0.0
  %582 = vmatprep.subr.mxu0 0.0
  %583 = vmatpush2.msra.mxu0 0.0
  %584 = vmatprep.subr.mxu0 0.0
  %585 = vmatpush2.msra.mxu0 0.0
  %586 = vmatprep.subr.mxu0 0.0
  %587 = vmatpush2.msra.mxu0 0.0
  %588 = vmatprep.subr.mxu0 0.0
  %589 = vmatpush2.msra.mxu0 0.0
  %590 = vmatprep.subr.mxu0 0.0
  %591 = vmatpush2.msra.mxu0 0.0
  %592 = vmatprep.subr.mxu0 0.0
  %593 = vmatpush2.msra.mxu0 0.0
  %594 = vmatprep.subr.mxu0 0.0
  %595 = vmatpush2.msra.mxu0 0.0
  %596 = vmatprep.subr.mxu0 0.0
  %597 = vmatpush2.msra.mxu0 0.0
  %598 = vmatprep.subr.mxu0 0.0
  %599 = vmatpush2.msra.mxu0 0.0
  %600 = vmatprep.subr.mxu0 0.0
  %601 = vmatpush2.msra.mxu0 0.0
  %602 = vmatprep.subr.mxu0 0.0
  %603 = vmatpush2.msra.mxu0 0.0
  %604 = vmatprep.subr.mxu0 0.0
  %605 = vmatpush2.msra.mxu0 0.0
  %606 = vmatprep.subr.mxu0 0.0
  %607 = vmatpush2.msra.mxu0 0.0
  %608 = vmatprep.subr.mxu0 0.0
  %609 = vmatpush2.msra.mxu0 0.0
  %610 = vmatprep.subr.mxu0 0.0
  %611 = vmatpush2.msra.mxu0 0.0
  %612 = vmatprep.mubr.f32.mxu0 0.0
  %613 = vmatmul.mubr.f32.gmra.mxu0 %v456
  %v614 = vpop.f32.mrf.mxu0
  %v615 = vadd.f32 0.0, %v614
  %v616 = vpop.f32.mrf.mxu0
  %v617 = vadd.f32 0.0, %v616
  %618 = vdwg.mxu0
  %619 = vmatprep.subr.mxu0 0.0
  %620 = vmatpush1.msra.mxu0 0.0
  %621 = vmatprep.subr.mxu0 0.0
  %622 = vmatpush1.msra.mxu0 0.0
  %623 = vmatprep.subr.mxu0 0.0
  %624 = vmatpush1.msra.mxu0 0.0
  %625 = vmatprep.subr.mxu0 0.0
  %626 = vmatpush1.msra.mxu0 0.0
  %627 = vmatprep.subr.mxu0 0.0
  %628 = vmatpush1.msra.mxu0 0.0
  %629 = vmatprep.subr.mxu0 0.0
  %630 = vmatpush1.msra.mxu0 0.0
  %631 = vmatprep.subr.mxu0 0.0
  %632 = vmatpush1.msra.mxu0 0.0
  %633 = vmatprep.subr.mxu0 0.0
  %634 = vmatpush1.msra.mxu0 0.0
  %635 = vmatprep.subr.mxu0 0.0
  %636 = vmatpush1.msra.mxu0 0.0
  %637 = vmatprep.subr.mxu0 0.0
  %638 = vmatpush1.msra.mxu0 0.0
  %639 = vmatprep.subr.mxu0 0.0
  %640 = vmatpush1.msra.mxu0 0.0
  %641 = vmatprep.subr.mxu0 %v475
  %642 = vmatpush1.msra.mxu0 %v472
  %643 = vmatprep.subr.mxu0 %v447
  %644 = vmatpush1.msra.mxu0 %v446
  %645 = vmatprep.subr.mxu0 %v441
  %646 = vmatpush1.msra.mxu0 %v440
  %647 = vmatprep.subr.mxu0 %v435
  %648 = vmatpush1.msra.mxu0 %v434
  %649 = vmatprep.subr.mxu0 %v429
  %650 = vmatpush1.msra.mxu0 %v428
  %651 = vmatprep.subr.mxu0 0.0
  %652 = vmatpush2.msra.mxu0 0.0
  %653 = vmatprep.subr.mxu0 0.0
  %654 = vmatpush2.msra.mxu0 0.0
  %655 = vmatprep.subr.mxu0 0.0
  %656 = vmatpush2.msra.mxu0 0.0
  %657 = vmatprep.subr.mxu0 0.0
  %658 = vmatpush2.msra.mxu0 0.0
  %659 = vmatprep.subr.mxu0 0.0
  %660 = vmatpush2.msra.mxu0 0.0
  %661 = vmatprep.subr.mxu0 0.0
  %662 = vmatpush2.msra.mxu0 0.0
  %663 = vmatprep.subr.mxu0 0.0
  %664 = vmatpush2.msra.mxu0 0.0
  %665 = vmatprep.subr.mxu0 0.0
  %666 = vmatpush2.msra.mxu0 0.0
  %667 = vmatprep.subr.mxu0 0.0
  %668 = vmatpush2.msra.mxu0 0.0
  %669 = vmatprep.subr.mxu0 0.0
  %670 = vmatpush2.msra.mxu0 0.0
  %671 = vmatprep.subr.mxu0 0.0
  %672 = vmatpush2.msra.mxu0 0.0
  %673 = vmatprep.subr.mxu0 0.0
  %674 = vmatpush2.msra.mxu0 0.0
  %675 = vmatprep.subr.mxu0 0.0
  %676 = vmatpush2.msra.mxu0 0.0
  %677 = vmatprep.subr.mxu0 0.0
  %678 = vmatpush2.msra.mxu0 0.0
  %679 = vmatprep.subr.mxu0 0.0
  %680 = vmatpush2.msra.mxu0 0.0
  %681 = vmatprep.subr.mxu0 0.0
  %682 = vmatpush2.msra.mxu0 0.0
  %683 = vmatprep.mubr.f32.mxu0 0.0
  %684 = vmatmul.mubr.f32.gmra.mxu0 %v456
  %v685 = vpop.f32.mrf.mxu0
  %v686 = vadd.f32 0.0, %v685
  %v687 = vpop.f32.mrf.mxu0
  %v688 = vadd.f32 0.0, %v687
  %689 = vdwg.mxu0
  %v690 = vld [vmem:[%s3] sm:$0xff]
  %v691 = vld [vmem:[%s4] sm:$0xff]
  %v693 = vlaneseq
  %v694 = vshrl.u32 %v693, 7
  %v695 = vsub.s32 0, %v694
  %v696 = vrot.slane %v29, %v695
  %v697 = vlaneseq
  %v698 = vshrl.u32 %v697, 7
  %v699 = vsub.s32 1, %v698
  %v700 = vrot.slane %v29, %v699
  %v701 = vlaneseq
  %v702 = vshrl.u32 %v701, 7
  %v703 = vsub.s32 2, %v702
  %v704 = vrot.slane %v29, %v703
  %v705 = vlaneseq
  %v706 = vshrl.u32 %v705, 7
  %v707 = vsub.s32 3, %v706
  %v708 = vrot.slane %v29, %v707
  %v709 = vlaneseq
  %v710 = vshrl.u32 %v709, 7
  %v711 = vsub.s32 4, %v710
  %v712 = vrot.slane %v29, %v711
  %v713 = vlaneseq
  %v714 = vshrl.u32 %v713, 7
  %v715 = vsub.s32 5, %v714
  %v716 = vrot.slane %v29, %v715
  %v723 = vmul.f32 %v544, %v696
  %v724 = vmul.f32 %v546, %v700
  %v725 = vmul.f32 %v615, %v704
  %v726 = vmul.f32 %v617, %v708
  %v727 = vmul.f32 %v686, %v712
  %v728 = vmul.f32 %v688, %v716
  %v729 = vadd.f32 %v723, %v724
  %v730 = vadd.f32 %v729, %v725
  %v731 = vadd.f32 %v730, %v726
  %v732 = vadd.f32 %v731, %v727
  %v733 = vadd.f32 %v732, %v728
  %734 = vadd.xlane.f32.xlu0 %v733
  %v735 = vpop.xlane.xlu0 %734
  %v736 = vrcp.pop 512.0
  %v737 = vmul.f32 %v735, %v736
  %v738 = vsub.f32 %v544, %v737
  %v739 = vsub.f32 %v546, %v737
  %v740 = vsub.f32 %v615, %v737
  %v741 = vsub.f32 %v617, %v737
  %v742 = vsub.f32 %v686, %v737
  %v743 = vsub.f32 %v688, %v737
  %v744 = vmul.f32 %v738, %v696
  %v745 = vmul.f32 %v739, %v700
  %v746 = vmul.f32 %v740, %v704
  %v747 = vmul.f32 %v741, %v708
  %v748 = vmul.f32 %v742, %v712
  %v749 = vmul.f32 %v743, %v716
  %v750 = vmul.f32 %v744, %v744
  %v751 = vmul.f32 %v745, %v745
  %v752 = vmul.f32 %v746, %v746
  %v753 = vmul.f32 %v747, %v747
  %v754 = vmul.f32 %v748, %v748
  %v755 = vmul.f32 %v749, %v749
  %v756 = vadd.f32 %v750, %v751
  %v757 = vadd.f32 %v756, %v752
  %v758 = vadd.f32 %v757, %v753
  %v759 = vadd.f32 %v758, %v754
  %v760 = vadd.f32 %v759, %v755
  %761 = vadd.xlane.f32.xlu0 %v760
  %v762 = vpop.xlane.xlu0 %761
  %v763 = vmul.f32 %v762, %v736
  %v764 = vadd.f32 %v763, 1e-05
  %v765 = vrsqrt.pop %v764
  %v766 = vmul.f32 %v690, %v765
  %v767 = vmul.f32 %v737, %v766
  %v768 = vsub.f32 %v691, %v767
  %770 = vset.pattern.permute.xlu0 0
  %771 = vperm.xlu0 %770, %v766
  %v772 = vpop.permute.xlu0 %771
  %v774 = vmul.f32 %v544, %v772
  %v775 = vmul.f32 %v546, %v772
  %v776 = vmul.f32 %v615, %v772
  %v777 = vmul.f32 %v617, %v772
  %v778 = vmul.f32 %v686, %v772
  %v779 = vmul.f32 %v688, %v772
  %781 = vset.pattern.permute.xlu0 0
  %782 = vperm.xlu0 %781, %v768
  %v783 = vpop.permute.xlu0 %782
  %v785 = vadd.f32 %v774, %v783
  %v786 = vadd.f32 %v775, %v783
  %v787 = vadd.f32 %v776, %v783
  %v788 = vadd.f32 %v777, %v783
  %v789 = vadd.f32 %v778, %v783
  %v790 = vadd.f32 %v779, %v783
  %v791 = vmax.f32 %v785, 0.0
  %v792 = vmax.f32 %v786, 0.0
  %v793 = vmax.f32 %v787, 0.0
  %v794 = vmax.f32 %v788, 0.0
  %v795 = vmax.f32 %v789, 0.0
  %v796 = vmax.f32 %v790, 0.0
  %v797 = vmul.f32 %v791, %v696
  %v798 = vmul.f32 %v792, %v700
  %v799 = vmul.f32 %v793, %v704
  %v800 = vmul.f32 %v794, %v708
  %v801 = vmul.f32 %v795, %v712
  %v802 = vmul.f32 %v796, %v716
  %803 = vst [vmem:[#allocation4] sm:$0xff] 0.0
  %804 = vst [vmem:[#allocation4 + $0x8] sm:$0xff] 0.0
  %805 = vst [vmem:[#allocation4 + $0x10] sm:$0xff] 0.0
  %vm806 = vcmask 588800
  %807 = vst.msk [vmem:[#allocation4 + $0x18] sm:$0xff] %vm806, 0.0
  %811 = vrot.lane.b32.xlu0 %v797, 25
  %v812 = vpop.permute.xlu0 %811
  %813 = vrot.lane.b32.xlu0 %v798, 25
  %v814 = vpop.permute.xlu0 %813
  %815 = vrot.lane.b32.xlu0 %v799, 25
  %v816 = vpop.permute.xlu0 %815
  %vm817 = vcmask 203776
  %v818 = vsel %vm817, %v812, %v814
  %v819 = vsel %vm817, %v814, %v816
  %vm824 = vcmask 1047752
  %825 = vst.msk [vmem:[#allocation4] sm:$0xff] %vm824, %v812
  %826 = vst [vmem:[#allocation4 + $0x8] sm:$0xff] %v818
  %827 = vst [vmem:[#allocation4 + $0x10] sm:$0xff] %v819
  %828 = vst.msk [vmem:[#allocation4 + $0x18] sm:$0xff] %vm817, %v816
  %v829 = vld [vmem:[#allocation4] sm:$0xff]
  %v830 = vld [vmem:[#allocation4 + $0x8] sm:$0xff]
  %v831 = vld [vmem:[#allocation4 + $0x10] sm:$0xff]
  %832 = vst [vmem:[#allocation3] sm:$0xff] %v829
  %833 = vst [vmem:[#allocation3 + $0x8] sm:$0xff] %v830
  %834 = vst [vmem:[#allocation3 + $0x10] sm:$0xff] %v831
  %v835 = vld [vmem:[#allocation4] sm:$0xff]
  %v836 = vld [vmem:[#allocation4 + $0x8] sm:$0xff]
  %v837 = vld [vmem:[#allocation4 + $0x10] sm:$0xff]
  %v838 = vld [vmem:[#allocation4 + $0x18] sm:$0xff]
  %843 = vrot.lane.b32.xlu0 %v835, 127
  %v844 = vpop.permute.xlu0 %843
  %845 = vrot.lane.b32.xlu0 %v836, 127
  %v846 = vpop.permute.xlu0 %845
  %847 = vrot.lane.b32.xlu0 %v837, 127
  %v848 = vpop.permute.xlu0 %847
  %849 = vrot.lane.b32.xlu0 %v838, 127
  %v850 = vpop.permute.xlu0 %849
  %v851 = vsel %vm52, %v844, %v846
  %v852 = vsel %vm52, %v846, %v848
  %v853 = vsel %vm52, %v848, %v850
  %857 = vst [vmem:[#allocation3 + $0x30] sm:$0xff] %v851
  %858 = vst [vmem:[#allocation3 + $0x38] sm:$0xff] %v852
  %859 = vst [vmem:[#allocation3 + $0x40] sm:$0xff] %v853
  %v860 = vld [vmem:[#allocation4] sm:$0xff]
  %v861 = vld [vmem:[#allocation4 + $0x8] sm:$0xff]
  %v862 = vld [vmem:[#allocation4 + $0x10] sm:$0xff]
  %v863 = vld [vmem:[#allocation4 + $0x18] sm:$0xff]
  %868 = vrot.lane.b32.xlu0 %v860, 126
  %v869 = vpop.permute.xlu0 %868
  %870 = vrot.lane.b32.xlu0 %v861, 126
  %v871 = vpop.permute.xlu0 %870
  %872 = vrot.lane.b32.xlu0 %v862, 126
  %v873 = vpop.permute.xlu0 %872
  %874 = vrot.lane.b32.xlu0 %v863, 126
  %v875 = vpop.permute.xlu0 %874
  %v876 = vsel %vm76, %v869, %v871
  %v877 = vsel %vm76, %v871, %v873
  %v878 = vsel %vm76, %v873, %v875
  %882 = vst [vmem:[#allocation3 + $0x60] sm:$0xff] %v876
  %883 = vst [vmem:[#allocation3 + $0x68] sm:$0xff] %v877
  %884 = vst [vmem:[#allocation3 + $0x70] sm:$0xff] %v878
  %v885 = vld [vmem:[#allocation4] sm:$0xff]
  %v886 = vld [vmem:[#allocation4 + $0x8] sm:$0xff]
  %v887 = vld [vmem:[#allocation4 + $0x10] sm:$0xff]
  %v888 = vld [vmem:[#allocation4 + $0x18] sm:$0xff]
  %893 = vrot.lane.b32.xlu0 %v885, 104
  %v894 = vpop.permute.xlu0 %893
  %895 = vrot.lane.b32.xlu0 %v886, 104
  %v896 = vpop.permute.xlu0 %895
  %897 = vrot.lane.b32.xlu0 %v887, 104
  %v898 = vpop.permute.xlu0 %897
  %899 = vrot.lane.b32.xlu0 %v888, 104
  %v900 = vpop.permute.xlu0 %899
  %v901 = vsel %vm100, %v894, %v896
  %v902 = vsel %vm100, %v896, %v898
  %v903 = vsel %vm100, %v898, %v900
  %907 = vst [vmem:[#allocation3 + $0x90] sm:$0xff] %v901
  %908 = vst [vmem:[#allocation3 + $0x98] sm:$0xff] %v902
  %909 = vst [vmem:[#allocation3 + $0xa0] sm:$0xff] %v903
  %v910 = vld [vmem:[#allocation4] sm:$0xff]
  %v911 = vld [vmem:[#allocation4 + $0x8] sm:$0xff]
  %v912 = vld [vmem:[#allocation4 + $0x10] sm:$0xff]
  %v913 = vld [vmem:[#allocation4 + $0x18] sm:$0xff]
  %918 = vrot.lane.b32.xlu0 %v910, 103
  %v919 = vpop.permute.xlu0 %918
  %920 = vrot.lane.b32.xlu0 %v911, 103
  %v921 = vpop.permute.xlu0 %920
  %922 = vrot.lane.b32.xlu0 %v912, 103
  %v923 = vpop.permute.xlu0 %922
  %924 = vrot.lane.b32.xlu0 %v913, 103
  %v925 = vpop.permute.xlu0 %924
  %v926 = vsel %vm124, %v919, %v921
  %v927 = vsel %vm124, %v921, %v923
  %v928 = vsel %vm124, %v923, %v925
  %932 = vst [vmem:[#allocation3 + $0xc0] sm:$0xff] %v926
  %933 = vst [vmem:[#allocation3 + $0xc8] sm:$0xff] %v927
  %934 = vst [vmem:[#allocation3 + $0xd0] sm:$0xff] %v928
  %v935 = vld [vmem:[#allocation4] sm:$0xff]
  %v936 = vld [vmem:[#allocation4 + $0x8] sm:$0xff]
  %v937 = vld [vmem:[#allocation4 + $0x10] sm:$0xff]
  %v938 = vld [vmem:[#allocation4 + $0x18] sm:$0xff]
  %943 = vrot.lane.b32.xlu0 %v935, 102
  %v944 = vpop.permute.xlu0 %943
  %945 = vrot.lane.b32.xlu0 %v936, 102
  %v946 = vpop.permute.xlu0 %945
  %947 = vrot.lane.b32.xlu0 %v937, 102
  %v948 = vpop.permute.xlu0 %947
  %949 = vrot.lane.b32.xlu0 %v938, 102
  %v950 = vpop.permute.xlu0 %949
  %v951 = vsel %vm148, %v944, %v946
  %v952 = vsel %vm148, %v946, %v948
  %v953 = vsel %vm148, %v948, %v950
  %957 = vst [vmem:[#allocation3 + $0xf0] sm:$0xff] %v951
  %958 = vst [vmem:[#allocation3 + $0xf8] sm:$0xff] %v952
  %959 = vst [vmem:[#allocation3 + $0x100] sm:$0xff] %v953
  %v960 = vld [vmem:[#allocation4] sm:$0xff]
  %v961 = vld [vmem:[#allocation4 + $0x8] sm:$0xff]
  %v962 = vld [vmem:[#allocation4 + $0x10] sm:$0xff]
  %v963 = vld [vmem:[#allocation4 + $0x18] sm:$0xff]
  %968 = vrot.lane.b32.xlu0 %v960, 80
  %v969 = vpop.permute.xlu0 %968
  %970 = vrot.lane.b32.xlu0 %v961, 80
  %v971 = vpop.permute.xlu0 %970
  %972 = vrot.lane.b32.xlu0 %v962, 80
  %v973 = vpop.permute.xlu0 %972
  %974 = vrot.lane.b32.xlu0 %v963, 80
  %v975 = vpop.permute.xlu0 %974
  %v976 = vsel %vm172, %v969, %v971
  %v977 = vsel %vm172, %v971, %v973
  %v978 = vsel %vm172, %v973, %v975
  %982 = vst [vmem:[#allocation3 + $0x120] sm:$0xff] %v976
  %983 = vst [vmem:[#allocation3 + $0x128] sm:$0xff] %v977
  %984 = vst [vmem:[#allocation3 + $0x130] sm:$0xff] %v978
  %v985 = vld [vmem:[#allocation4] sm:$0xff]
  %v986 = vld [vmem:[#allocation4 + $0x8] sm:$0xff]
  %v987 = vld [vmem:[#allocation4 + $0x10] sm:$0xff]
  %v988 = vld [vmem:[#allocation4 + $0x18] sm:$0xff]
  %993 = vrot.lane.b32.xlu0 %v985, 79
  %v994 = vpop.permute.xlu0 %993
  %995 = vrot.lane.b32.xlu0 %v986, 79
  %v996 = vpop.permute.xlu0 %995
  %997 = vrot.lane.b32.xlu0 %v987, 79
  %v998 = vpop.permute.xlu0 %997
  %999 = vrot.lane.b32.xlu0 %v988, 79
  %v1000 = vpop.permute.xlu0 %999
  %v1001 = vsel %vm196, %v994, %v996
  %v1002 = vsel %vm196, %v996, %v998
  %v1003 = vsel %vm196, %v998, %v1000
  %1007 = vst [vmem:[#allocation3 + $0x150] sm:$0xff] %v1001
  %1008 = vst [vmem:[#allocation3 + $0x158] sm:$0xff] %v1002
  %1009 = vst [vmem:[#allocation3 + $0x160] sm:$0xff] %v1003
  %v1010 = vld [vmem:[#allocation4] sm:$0xff]
  %v1011 = vld [vmem:[#allocation4 + $0x8] sm:$0xff]
  %v1012 = vld [vmem:[#allocation4 + $0x10] sm:$0xff]
  %v1013 = vld [vmem:[#allocation4 + $0x18] sm:$0xff]
  %1018 = vrot.lane.b32.xlu0 %v1010, 78
  %v1019 = vpop.permute.xlu0 %1018
  %1020 = vrot.lane.b32.xlu0 %v1011, 78
  %v1021 = vpop.permute.xlu0 %1020
  %1022 = vrot.lane.b32.xlu0 %v1012, 78
  %v1023 = vpop.permute.xlu0 %1022
  %1024 = vrot.lane.b32.xlu0 %v1013, 78
  %v1025 = vpop.permute.xlu0 %1024
  %v1026 = vsel %vm220, %v1019, %v1021
  %v1027 = vsel %vm220, %v1021, %v1023
  %v1028 = vsel %vm220, %v1023, %v1025
  %1032 = vst [vmem:[#allocation3 + $0x180] sm:$0xff] %v1026
  %1033 = vst [vmem:[#allocation3 + $0x188] sm:$0xff] %v1027
  %1034 = vst [vmem:[#allocation3 + $0x190] sm:$0xff] %v1028
  %1038 = vrot.lane.b32.xlu0 %v800, 25
  %v1039 = vpop.permute.xlu0 %1038
  %1040 = vrot.lane.b32.xlu0 %v801, 25
  %v1041 = vpop.permute.xlu0 %1040
  %1042 = vrot.lane.b32.xlu0 %v802, 25
  %v1043 = vpop.permute.xlu0 %1042
  %v1044 = vsel %vm817, %v1039, %v1041
  %v1045 = vsel %vm817, %v1041, %v1043
  %1050 = vst.msk [vmem:[#allocation4] sm:$0xff] %vm824, %v1039
  %1051 = vst [vmem:[#allocation4 + $0x8] sm:$0xff] %v1044
  %1052 = vst [vmem:[#allocation4 + $0x10] sm:$0xff] %v1045
  %1053 = vst.msk [vmem:[#allocation4 + $0x18] sm:$0xff] %vm817, %v1043
  %v1054 = vld [vmem:[#allocation4] sm:$0xff]
  %v1055 = vld [vmem:[#allocation4 + $0x8] sm:$0xff]
  %v1056 = vld [vmem:[#allocation4 + $0x10] sm:$0xff]
  %1057 = vst [vmem:[#allocation3 + $0x18] sm:$0xff] %v1054
  %1058 = vst [vmem:[#allocation3 + $0x20] sm:$0xff] %v1055
  %1059 = vst [vmem:[#allocation3 + $0x28] sm:$0xff] %v1056
  %v1060 = vld [vmem:[#allocation4] sm:$0xff]
  %v1061 = vld [vmem:[#allocation4 + $0x8] sm:$0xff]
  %v1062 = vld [vmem:[#allocation4 + $0x10] sm:$0xff]
  %v1063 = vld [vmem:[#allocation4 + $0x18] sm:$0xff]
  %1068 = vrot.lane.b32.xlu0 %v1060, 127
  %v1069 = vpop.permute.xlu0 %1068
  %1070 = vrot.lane.b32.xlu0 %v1061, 127
  %v1071 = vpop.permute.xlu0 %1070
  %1072 = vrot.lane.b32.xlu0 %v1062, 127
  %v1073 = vpop.permute.xlu0 %1072
  %1074 = vrot.lane.b32.xlu0 %v1063, 127
  %v1075 = vpop.permute.xlu0 %1074
  %v1076 = vsel %vm52, %v1069, %v1071
  %v1077 = vsel %vm52, %v1071, %v1073
  %v1078 = vsel %vm52, %v1073, %v1075
  %1082 = vst [vmem:[#allocation3 + $0x48] sm:$0xff] %v1076
  %1083 = vst [vmem:[#allocation3 + $0x50] sm:$0xff] %v1077
  %1084 = vst [vmem:[#allocation3 + $0x58] sm:$0xff] %v1078
  %v1085 = vld [vmem:[#allocation4] sm:$0xff]
  %v1086 = vld [vmem:[#allocation4 + $0x8] sm:$0xff]
  %v1087 = vld [vmem:[#allocation4 + $0x10] sm:$0xff]
  %v1088 = vld [vmem:[#allocation4 + $0x18] sm:$0xff]
  %1093 = vrot.lane.b32.xlu0 %v1085, 126
  %v1094 = vpop.permute.xlu0 %1093
  %1095 = vrot.lane.b32.xlu0 %v1086, 126
  %v1096 = vpop.permute.xlu0 %1095
  %1097 = vrot.lane.b32.xlu0 %v1087, 126
  %v1098 = vpop.permute.xlu0 %1097
  %1099 = vrot.lane.b32.xlu0 %v1088, 126
  %v1100 = vpop.permute.xlu0 %1099
  %v1101 = vsel %vm76, %v1094, %v1096
  %v1102 = vsel %vm76, %v1096, %v1098
  %v1103 = vsel %vm76, %v1098, %v1100
  %1107 = vst [vmem:[#allocation3 + $0x78] sm:$0xff] %v1101
  %1108 = vst [vmem:[#allocation3 + $0x80] sm:$0xff] %v1102
  %1109 = vst [vmem:[#allocation3 + $0x88] sm:$0xff] %v1103
  %v1110 = vld [vmem:[#allocation4] sm:$0xff]
  %v1111 = vld [vmem:[#allocation4 + $0x8] sm:$0xff]
  %v1112 = vld [vmem:[#allocation4 + $0x10] sm:$0xff]
  %v1113 = vld [vmem:[#allocation4 + $0x18] sm:$0xff]
  %1118 = vrot.lane.b32.xlu0 %v1110, 104
  %v1119 = vpop.permute.xlu0 %1118
  %1120 = vrot.lane.b32.xlu0 %v1111, 104
  %v1121 = vpop.permute.xlu0 %1120
  %1122 = vrot.lane.b32.xlu0 %v1112, 104
  %v1123 = vpop.permute.xlu0 %1122
  %1124 = vrot.lane.b32.xlu0 %v1113, 104
  %v1125 = vpop.permute.xlu0 %1124
  %v1126 = vsel %vm100, %v1119, %v1121
  %v1127 = vsel %vm100, %v1121, %v1123
  %v1128 = vsel %vm100, %v1123, %v1125
  %1132 = vst [vmem:[#allocation3 + $0xa8] sm:$0xff] %v1126
  %1133 = vst [vmem:[#allocation3 + $0xb0] sm:$0xff] %v1127
  %1134 = vst [vmem:[#allocation3 + $0xb8] sm:$0xff] %v1128
  %v1135 = vld [vmem:[#allocation4] sm:$0xff]
  %v1136 = vld [vmem:[#allocation4 + $0x8] sm:$0xff]
  %v1137 = vld [vmem:[#allocation4 + $0x10] sm:$0xff]
  %v1138 = vld [vmem:[#allocation4 + $0x18] sm:$0xff]
  %1143 = vrot.lane.b32.xlu0 %v1135, 103
  %v1144 = vpop.permute.xlu0 %1143
  %1145 = vrot.lane.b32.xlu0 %v1136, 103
  %v1146 = vpop.permute.xlu0 %1145
  %1147 = vrot.lane.b32.xlu0 %v1137, 103
  %v1148 = vpop.permute.xlu0 %1147
  %1149 = vrot.lane.b32.xlu0 %v1138, 103
  %v1150 = vpop.permute.xlu0 %1149
  %v1151 = vsel %vm124, %v1144, %v1146
  %v1152 = vsel %vm124, %v1146, %v1148
  %v1153 = vsel %vm124, %v1148, %v1150
  %1157 = vst [vmem:[#allocation3 + $0xd8] sm:$0xff] %v1151
  %1158 = vst [vmem:[#allocation3 + $0xe0] sm:$0xff] %v1152
  %1159 = vst [vmem:[#allocation3 + $0xe8] sm:$0xff] %v1153
  %v1160 = vld [vmem:[#allocation4] sm:$0xff]
  %v1161 = vld [vmem:[#allocation4 + $0x8] sm:$0xff]
  %v1162 = vld [vmem:[#allocation4 + $0x10] sm:$0xff]
  %v1163 = vld [vmem:[#allocation4 + $0x18] sm:$0xff]
  %1168 = vrot.lane.b32.xlu0 %v1160, 102
  %v1169 = vpop.permute.xlu0 %1168
  %1170 = vrot.lane.b32.xlu0 %v1161, 102
  %v1171 = vpop.permute.xlu0 %1170
  %1172 = vrot.lane.b32.xlu0 %v1162, 102
  %v1173 = vpop.permute.xlu0 %1172
  %1174 = vrot.lane.b32.xlu0 %v1163, 102
  %v1175 = vpop.permute.xlu0 %1174
  %v1176 = vsel %vm148, %v1169, %v1171
  %v1177 = vsel %vm148, %v1171, %v1173
  %v1178 = vsel %vm148, %v1173, %v1175
  %1182 = vst [vmem:[#allocation3 + $0x108] sm:$0xff] %v1176
  %1183 = vst [vmem:[#allocation3 + $0x110] sm:$0xff] %v1177
  %1184 = vst [vmem:[#allocation3 + $0x118] sm:$0xff] %v1178
  %v1185 = vld [vmem:[#allocation4] sm:$0xff]
  %v1186 = vld [vmem:[#allocation4 + $0x8] sm:$0xff]
  %v1187 = vld [vmem:[#allocation4 + $0x10] sm:$0xff]
  %v1188 = vld [vmem:[#allocation4 + $0x18] sm:$0xff]
  %1193 = vrot.lane.b32.xlu0 %v1185, 80
  %v1194 = vpop.permute.xlu0 %1193
  %1195 = vrot.lane.b32.xlu0 %v1186, 80
  %v1196 = vpop.permute.xlu0 %1195
  %1197 = vrot.lane.b32.xlu0 %v1187, 80
  %v1198 = vpop.permute.xlu0 %1197
  %1199 = vrot.lane.b32.xlu0 %v1188, 80
  %v1200 = vpop.permute.xlu0 %1199
  %v1201 = vsel %vm172, %v1194, %v1196
  %v1202 = vsel %vm172, %v1196, %v1198
  %v1203 = vsel %vm172, %v1198, %v1200
  %1207 = vst [vmem:[#allocation3 + $0x138] sm:$0xff] %v1201
  %1208 = vst [vmem:[#allocation3 + $0x140] sm:$0xff] %v1202
  %1209 = vst [vmem:[#allocation3 + $0x148] sm:$0xff] %v1203
  %v1210 = vld [vmem:[#allocation4] sm:$0xff]
  %v1211 = vld [vmem:[#allocation4 + $0x8] sm:$0xff]
  %v1212 = vld [vmem:[#allocation4 + $0x10] sm:$0xff]
  %v1213 = vld [vmem:[#allocation4 + $0x18] sm:$0xff]
  %1218 = vrot.lane.b32.xlu0 %v1210, 79
  %v1219 = vpop.permute.xlu0 %1218
  %1220 = vrot.lane.b32.xlu0 %v1211, 79
  %v1221 = vpop.permute.xlu0 %1220
  %1222 = vrot.lane.b32.xlu0 %v1212, 79
  %v1223 = vpop.permute.xlu0 %1222
  %1224 = vrot.lane.b32.xlu0 %v1213, 79
  %v1225 = vpop.permute.xlu0 %1224
  %v1226 = vsel %vm196, %v1219, %v1221
  %v1227 = vsel %vm196, %v1221, %v1223
  %v1228 = vsel %vm196, %v1223, %v1225
  %1232 = vst [vmem:[#allocation3 + $0x168] sm:$0xff] %v1226
  %1233 = vst [vmem:[#allocation3 + $0x170] sm:$0xff] %v1227
  %1234 = vst [vmem:[#allocation3 + $0x178] sm:$0xff] %v1228
  %v1235 = vld [vmem:[#allocation4] sm:$0xff]
  %v1236 = vld [vmem:[#allocation4 + $0x8] sm:$0xff]
  %v1237 = vld [vmem:[#allocation4 + $0x10] sm:$0xff]
  %v1238 = vld [vmem:[#allocation4 + $0x18] sm:$0xff]
  %1243 = vrot.lane.b32.xlu0 %v1235, 78
  %v1244 = vpop.permute.xlu0 %1243
  %1245 = vrot.lane.b32.xlu0 %v1236, 78
  %v1246 = vpop.permute.xlu0 %1245
  %1247 = vrot.lane.b32.xlu0 %v1237, 78
  %v1248 = vpop.permute.xlu0 %1247
  %1249 = vrot.lane.b32.xlu0 %v1238, 78
  %v1250 = vpop.permute.xlu0 %1249
  %v1251 = vsel %vm220, %v1244, %v1246
  %v1252 = vsel %vm220, %v1246, %v1248
  %v1253 = vsel %vm220, %v1248, %v1250
  %1257 = vst [vmem:[#allocation3 + $0x198] sm:$0xff] %v1251
  %1258 = vst [vmem:[#allocation3 + $0x1a0] sm:$0xff] %v1252
  %1259 = vst [vmem:[#allocation3 + $0x1a8] sm:$0xff] %v1253
  %v1260 = vld [vmem:[%s2] sm:$0xff]
  %v1261 = vld [vmem:[#allocation3] sm:$0xff]
  %v1262 = vld [vmem:[#allocation3 + $0x8] sm:$0xff]
  %v1263 = vld [vmem:[#allocation3 + $0x10] sm:$0xff]
  %v1264 = vld [vmem:[#allocation3 + $0x18] sm:$0xff]
  %v1265 = vld [vmem:[#allocation3 + $0x20] sm:$0xff]
  %v1266 = vld [vmem:[#allocation3 + $0x28] sm:$0xff]
  %v1267 = vld [vmem:[#allocation3 + $0x30] sm:$0xff]
  %v1268 = vld [vmem:[#allocation3 + $0x38] sm:$0xff]
  %v1269 = vld [vmem:[#allocation3 + $0x40] sm:$0xff]
  %v1270 = vld [vmem:[#allocation3 + $0x48] sm:$0xff]
  %v1271 = vld [vmem:[#allocation3 + $0x50] sm:$0xff]
  %v1272 = vld [vmem:[#allocation3 + $0x58] sm:$0xff]
  %v1273 = vld [vmem:[#allocation3 + $0x60] sm:$0xff]
  %v1274 = vld [vmem:[#allocation3 + $0x68] sm:$0xff]
  %v1275 = vld [vmem:[#allocation3 + $0x70] sm:$0xff]
  %v1276 = vld [vmem:[#allocation3 + $0x78] sm:$0xff]
  %v1277 = vld [vmem:[#allocation3 + $0x80] sm:$0xff]
  %v1278 = vld [vmem:[#allocation3 + $0x88] sm:$0xff]
  %v1279 = vld [vmem:[#allocation3 + $0x90] sm:$0xff]
  %v1280 = vld [vmem:[#allocation3 + $0x98] sm:$0xff]
  %v1281 = vld [vmem:[#allocation3 + $0xa0] sm:$0xff]
  %v1282 = vld [vmem:[#allocation3 + $0xa8] sm:$0xff]
  %v1283 = vld [vmem:[#allocation3 + $0xb0] sm:$0xff]
  %v1284 = vld [vmem:[#allocation3 + $0xb8] sm:$0xff]
  %v1285 = vld [vmem:[#allocation3 + $0xc0] sm:$0xff]
  %v1286 = vld [vmem:[#allocation3 + $0xc8] sm:$0xff]
  %v1287 = vld [vmem:[#allocation3 + $0xd0] sm:$0xff]
  %v1288 = vld [vmem:[#allocation3 + $0xd8] sm:$0xff]
  %v1289 = vld [vmem:[#allocation3 + $0xe0] sm:$0xff]
  %v1290 = vld [vmem:[#allocation3 + $0xe8] sm:$0xff]
  %v1291 = vld [vmem:[#allocation3 + $0xf0] sm:$0xff]
  %v1292 = vld [vmem:[#allocation3 + $0xf8] sm:$0xff]
  %v1293 = vld [vmem:[#allocation3 + $0x100] sm:$0xff]
  %v1294 = vld [vmem:[#allocation3 + $0x108] sm:$0xff]
  %v1295 = vld [vmem:[#allocation3 + $0x110] sm:$0xff]
  %v1296 = vld [vmem:[#allocation3 + $0x118] sm:$0xff]
  %v1297 = vld [vmem:[#allocation3 + $0x120] sm:$0xff]
  %v1298 = vld [vmem:[#allocation3 + $0x128] sm:$0xff]
  %v1299 = vld [vmem:[#allocation3 + $0x130] sm:$0xff]
  %v1300 = vld [vmem:[#allocation3 + $0x138] sm:$0xff]
  %v1301 = vld [vmem:[#allocation3 + $0x140] sm:$0xff]
  %v1302 = vld [vmem:[#allocation3 + $0x148] sm:$0xff]
  %v1303 = vld [vmem:[#allocation3 + $0x150] sm:$0xff]
  %v1304 = vld [vmem:[#allocation3 + $0x158] sm:$0xff]
  %v1305 = vld [vmem:[#allocation3 + $0x160] sm:$0xff]
  %v1306 = vld [vmem:[#allocation3 + $0x168] sm:$0xff]
  %v1307 = vld [vmem:[#allocation3 + $0x170] sm:$0xff]
  %v1308 = vld [vmem:[#allocation3 + $0x178] sm:$0xff]
  %v1309 = vld [vmem:[#allocation3 + $0x180] sm:$0xff]
  %v1310 = vld [vmem:[#allocation3 + $0x188] sm:$0xff]
  %v1311 = vld [vmem:[#allocation3 + $0x190] sm:$0xff]
  %v1312 = vld [vmem:[#allocation3 + $0x198] sm:$0xff]
  %v1313 = vld [vmem:[#allocation3 + $0x1a0] sm:$0xff]
  %v1314 = vld [vmem:[#allocation3 + $0x1a8] sm:$0xff]
  %v1316 = vsel %vm806, %v1260, 0
  %1318 = vmatprep.subr.mxu0 0.0
  %1319 = vmatpush1.msra.mxu0 0.0
  %1320 = vmatprep.subr.mxu0 0.0
  %1321 = vmatpush1.msra.mxu0 0.0
  %1322 = vmatprep.subr.mxu0 0.0
  %1323 = vmatpush1.msra.mxu0 0.0
  %1324 = vmatprep.subr.mxu0 0.0
  %1325 = vmatpush1.msra.mxu0 0.0
  %1326 = vmatprep.subr.mxu0 0.0
  %1327 = vmatpush1.msra.mxu0 0.0
  %1328 = vmatprep.subr.mxu0 0.0
  %1329 = vmatpush1.msra.mxu0 0.0
  %1330 = vmatprep.subr.mxu0 0.0
  %1331 = vmatpush1.msra.mxu0 0.0
  %1332 = vmatprep.subr.mxu0 %v1310
  %1333 = vmatpush1.msra.mxu0 %v1309
  %1334 = vmatprep.subr.mxu0 %v1304
  %1335 = vmatpush1.msra.mxu0 %v1303
  %1336 = vmatprep.subr.mxu0 %v1298
  %1337 = vmatpush1.msra.mxu0 %v1297
  %1338 = vmatprep.subr.mxu0 %v1292
  %1339 = vmatpush1.msra.mxu0 %v1291
  %1340 = vmatprep.subr.mxu0 %v1286
  %1341 = vmatpush1.msra.mxu0 %v1285
  %1342 = vmatprep.subr.mxu0 %v1280
  %1343 = vmatpush1.msra.mxu0 %v1279
  %1344 = vmatprep.subr.mxu0 %v1274
  %1345 = vmatpush1.msra.mxu0 %v1273
  %1346 = vmatprep.subr.mxu0 %v1268
  %1347 = vmatpush1.msra.mxu0 %v1267
  %1348 = vmatprep.subr.mxu0 %v1262
  %1349 = vmatpush1.msra.mxu0 %v1261
  %1350 = vmatprep.subr.mxu0 0.0
  %1351 = vmatpush2.msra.mxu0 0.0
  %1352 = vmatprep.subr.mxu0 0.0
  %1353 = vmatpush2.msra.mxu0 0.0
  %1354 = vmatprep.subr.mxu0 0.0
  %1355 = vmatpush2.msra.mxu0 0.0
  %1356 = vmatprep.subr.mxu0 0.0
  %1357 = vmatpush2.msra.mxu0 0.0
  %1358 = vmatprep.subr.mxu0 0.0
  %1359 = vmatpush2.msra.mxu0 0.0
  %1360 = vmatprep.subr.mxu0 0.0
  %1361 = vmatpush2.msra.mxu0 0.0
  %1362 = vmatprep.subr.mxu0 0.0
  %1363 = vmatpush2.msra.mxu0 0.0
  %1364 = vmatprep.subr.mxu0 0.0
  %1365 = vmatpush2.msra.mxu0 0.0
  %1366 = vmatprep.subr.mxu0 0.0
  %1367 = vmatpush2.msra.mxu0 0.0
  %1368 = vmatprep.subr.mxu0 0.0
  %1369 = vmatpush2.msra.mxu0 0.0
  %1370 = vmatprep.subr.mxu0 0.0
  %1371 = vmatpush2.msra.mxu0 0.0
  %1372 = vmatprep.subr.mxu0 0.0
  %1373 = vmatpush2.msra.mxu0 0.0
  %1374 = vmatprep.subr.mxu0 0.0
  %1375 = vmatpush2.msra.mxu0 0.0
  %1376 = vmatprep.subr.mxu0 0.0
  %1377 = vmatpush2.msra.mxu0 0.0
  %1378 = vmatprep.subr.mxu0 0.0
  %1379 = vmatpush2.msra.mxu0 0.0
  %1380 = vmatprep.subr.mxu0 0.0
  %1381 = vmatpush2.msra.mxu0 0.0
  %1382 = vmatprep.mubr.f32.mxu0 0.0
  %1383 = vmatmul.mubr.f32.gmra.mxu0 %v1316
  %v1384 = vpop.f32.mrf.mxu0
  %v1385 = vadd.f32 0.0, %v1384
  %v1386 = vpop.f32.mrf.mxu0
  %v1387 = vadd.f32 0.0, %v1386
  %1388 = vdwg.mxu0
  %1389 = vmatprep.subr.mxu0 0.0
  %1390 = vmatpush1.msra.mxu0 0.0
  %1391 = vmatprep.subr.mxu0 0.0
  %1392 = vmatpush1.msra.mxu0 0.0
  %1393 = vmatprep.subr.mxu0 0.0
  %1394 = vmatpush1.msra.mxu0 0.0
  %1395 = vmatprep.subr.mxu0 0.0
  %1396 = vmatpush1.msra.mxu0 0.0
  %1397 = vmatprep.subr.mxu0 0.0
  %1398 = vmatpush1.msra.mxu0 0.0
  %1399 = vmatprep.subr.mxu0 0.0
  %1400 = vmatpush1.msra.mxu0 0.0
  %1401 = vmatprep.subr.mxu0 0.0
  %1402 = vmatpush1.msra.mxu0 0.0
  %1403 = vmatprep.subr.mxu0 %v1312
  %1404 = vmatpush1.msra.mxu0 %v1311
  %1405 = vmatprep.subr.mxu0 %v1306
  %1406 = vmatpush1.msra.mxu0 %v1305
  %1407 = vmatprep.subr.mxu0 %v1300
  %1408 = vmatpush1.msra.mxu0 %v1299
  %1409 = vmatprep.subr.mxu0 %v1294
  %1410 = vmatpush1.msra.mxu0 %v1293
  %1411 = vmatprep.subr.mxu0 %v1288
  %1412 = vmatpush1.msra.mxu0 %v1287
  %1413 = vmatprep.subr.mxu0 %v1282
  %1414 = vmatpush1.msra.mxu0 %v1281
  %1415 = vmatprep.subr.mxu0 %v1276
  %1416 = vmatpush1.msra.mxu0 %v1275
  %1417 = vmatprep.subr.mxu0 %v1270
  %1418 = vmatpush1.msra.mxu0 %v1269
  %1419 = vmatprep.subr.mxu0 %v1264
  %1420 = vmatpush1.msra.mxu0 %v1263
  %1421 = vmatprep.subr.mxu0 0.0
  %1422 = vmatpush2.msra.mxu0 0.0
  %1423 = vmatprep.subr.mxu0 0.0
  %1424 = vmatpush2.msra.mxu0 0.0
  %1425 = vmatprep.subr.mxu0 0.0
  %1426 = vmatpush2.msra.mxu0 0.0
  %1427 = vmatprep.subr.mxu0 0.0
  %1428 = vmatpush2.msra.mxu0 0.0
  %1429 = vmatprep.subr.mxu0 0.0
  %1430 = vmatpush2.msra.mxu0 0.0
  %1431 = vmatprep.subr.mxu0 0.0
  %1432 = vmatpush2.msra.mxu0 0.0
  %1433 = vmatprep.subr.mxu0 0.0
  %1434 = vmatpush2.msra.mxu0 0.0
  %1435 = vmatprep.subr.mxu0 0.0
  %1436 = vmatpush2.msra.mxu0 0.0
  %1437 = vmatprep.subr.mxu0 0.0
  %1438 = vmatpush2.msra.mxu0 0.0
  %1439 = vmatprep.subr.mxu0 0.0
  %1440 = vmatpush2.msra.mxu0 0.0
  %1441 = vmatprep.subr.mxu0 0.0
  %1442 = vmatpush2.msra.mxu0 0.0
  %1443 = vmatprep.subr.mxu0 0.0
  %1444 = vmatpush2.msra.mxu0 0.0
  %1445 = vmatprep.subr.mxu0 0.0
  %1446 = vmatpush2.msra.mxu0 0.0
  %1447 = vmatprep.subr.mxu0 0.0
  %1448 = vmatpush2.msra.mxu0 0.0
  %1449 = vmatprep.subr.mxu0 0.0
  %1450 = vmatpush2.msra.mxu0 0.0
  %1451 = vmatprep.subr.mxu0 0.0
  %1452 = vmatpush2.msra.mxu0 0.0
  %1453 = vmatprep.mubr.f32.mxu0 0.0
  %1454 = vmatmul.mubr.f32.gmra.mxu0 %v1316
  %v1455 = vpop.f32.mrf.mxu0
  %v1456 = vadd.f32 0.0, %v1455
  %v1457 = vpop.f32.mrf.mxu0
  %v1458 = vadd.f32 0.0, %v1457
  %1459 = vdwg.mxu0
  %1460 = vmatprep.subr.mxu0 0.0
  %1461 = vmatpush1.msra.mxu0 0.0
  %1462 = vmatprep.subr.mxu0 0.0
  %1463 = vmatpush1.msra.mxu0 0.0
  %1464 = vmatprep.subr.mxu0 0.0
  %1465 = vmatpush1.msra.mxu0 0.0
  %1466 = vmatprep.subr.mxu0 0.0
  %1467 = vmatpush1.msra.mxu0 0.0
  %1468 = vmatprep.subr.mxu0 0.0
  %1469 = vmatpush1.msra.mxu0 0.0
  %1470 = vmatprep.subr.mxu0 0.0
  %1471 = vmatpush1.msra.mxu0 0.0
  %1472 = vmatprep.subr.mxu0 0.0
  %1473 = vmatpush1.msra.mxu0 0.0
  %1474 = vmatprep.subr.mxu0 %v1314
  %1475 = vmatpush1.msra.mxu0 %v1313
  %1476 = vmatprep.subr.mxu0 %v1308
  %1477 = vmatpush1.msra.mxu0 %v1307
  %1478 = vmatprep.subr.mxu0 %v1302
  %1479 = vmatpush1.msra.mxu0 %v1301
  %1480 = vmatprep.subr.mxu0 %v1296
  %1481 = vmatpush1.msra.mxu0 %v1295
  %1482 = vmatprep.subr.mxu0 %v1290
  %1483 = vmatpush1.msra.mxu0 %v1289
  %1484 = vmatprep.subr.mxu0 %v1284
  %1485 = vmatpush1.msra.mxu0 %v1283
  %1486 = vmatprep.subr.mxu0 %v1278
  %1487 = vmatpush1.msra.mxu0 %v1277
  %1488 = vmatprep.subr.mxu0 %v1272
  %1489 = vmatpush1.msra.mxu0 %v1271
  %1490 = vmatprep.subr.mxu0 %v1266
  %1491 = vmatpush1.msra.mxu0 %v1265
  %1492 = vmatprep.subr.mxu0 0.0
  %1493 = vmatpush2.msra.mxu0 0.0
  %1494 = vmatprep.subr.mxu0 0.0
  %1495 = vmatpush2.msra.mxu0 0.0
  %1496 = vmatprep.subr.mxu0 0.0
  %1497 = vmatpush2.msra.mxu0 0.0
  %1498 = vmatprep.subr.mxu0 0.0
  %1499 = vmatpush2.msra.mxu0 0.0
  %1500 = vmatprep.subr.mxu0 0.0
  %1501 = vmatpush2.msra.mxu0 0.0
  %1502 = vmatprep.subr.mxu0 0.0
  %1503 = vmatpush2.msra.mxu0 0.0
  %1504 = vmatprep.subr.mxu0 0.0
  %1505 = vmatpush2.msra.mxu0 0.0
  %1506 = vmatprep.subr.mxu0 0.0
  %1507 = vmatpush2.msra.mxu0 0.0
  %1508 = vmatprep.subr.mxu0 0.0
  %1509 = vmatpush2.msra.mxu0 0.0
  %1510 = vmatprep.subr.mxu0 0.0
  %1511 = vmatpush2.msra.mxu0 0.0
  %1512 = vmatprep.subr.mxu0 0.0
  %1513 = vmatpush2.msra.mxu0 0.0
  %1514 = vmatprep.subr.mxu0 0.0
  %1515 = vmatpush2.msra.mxu0 0.0
  %1516 = vmatprep.subr.mxu0 0.0
  %1517 = vmatpush2.msra.mxu0 0.0
  %1518 = vmatprep.subr.mxu0 0.0
  %1519 = vmatpush2.msra.mxu0 0.0
  %1520 = vmatprep.subr.mxu0 0.0
  %1521 = vmatpush2.msra.mxu0 0.0
  %1522 = vmatprep.subr.mxu0 0.0
  %1523 = vmatpush2.msra.mxu0 0.0
  %1524 = vmatprep.mubr.f32.mxu0 0.0
  %1525 = vmatmul.mubr.f32.gmra.mxu0 %v1316
  %v1526 = vpop.f32.mrf.mxu0
  %v1527 = vadd.f32 0.0, %v1526
  %v1528 = vpop.f32.mrf.mxu0
  %v1529 = vadd.f32 0.0, %v1528
  %1530 = vdwg.mxu0
  %v1531 = vld [vmem:[%s5] sm:$0xff]
  %v1532 = vld [vmem:[%s6] sm:$0xff]
  %v1533 = vmul.f32 %v1385, %v696
  %v1534 = vmul.f32 %v1387, %v700
  %v1535 = vmul.f32 %v1456, %v704
  %v1536 = vmul.f32 %v1458, %v708
  %v1537 = vmul.f32 %v1527, %v712
  %v1538 = vmul.f32 %v1529, %v716
  %v1539 = vadd.f32 %v1533, %v1534
  %v1540 = vadd.f32 %v1539, %v1535
  %v1541 = vadd.f32 %v1540, %v1536
  %v1542 = vadd.f32 %v1541, %v1537
  %v1543 = vadd.f32 %v1542, %v1538
  %1544 = vadd.xlane.f32.xlu0 %v1543
  %v1545 = vpop.xlane.xlu0 %1544
  %v1546 = vmul.f32 %v1545, %v736
  %v1547 = vsub.f32 %v1385, %v1546
  %v1548 = vsub.f32 %v1387, %v1546
  %v1549 = vsub.f32 %v1456, %v1546
  %v1550 = vsub.f32 %v1458, %v1546
  %v1551 = vsub.f32 %v1527, %v1546
  %v1552 = vsub.f32 %v1529, %v1546
  %v1553 = vmul.f32 %v1547, %v696
  %v1554 = vmul.f32 %v1548, %v700
  %v1555 = vmul.f32 %v1549, %v704
  %v1556 = vmul.f32 %v1550, %v708
  %v1557 = vmul.f32 %v1551, %v712
  %v1558 = vmul.f32 %v1552, %v716
  %v1559 = vmul.f32 %v1553, %v1553
  %v1560 = vmul.f32 %v1554, %v1554
  %v1561 = vmul.f32 %v1555, %v1555
  %v1562 = vmul.f32 %v1556, %v1556
  %v1563 = vmul.f32 %v1557, %v1557
  %v1564 = vmul.f32 %v1558, %v1558
  %v1565 = vadd.f32 %v1559, %v1560
  %v1566 = vadd.f32 %v1565, %v1561
  %v1567 = vadd.f32 %v1566, %v1562
  %v1568 = vadd.f32 %v1567, %v1563
  %v1569 = vadd.f32 %v1568, %v1564
  %1570 = vadd.xlane.f32.xlu0 %v1569
  %v1571 = vpop.xlane.xlu0 %1570
  %v1572 = vmul.f32 %v1571, %v736
  %v1573 = vadd.f32 %v1572, 1e-05
  %v1574 = vrsqrt.pop %v1573
  %v1575 = vmul.f32 %v1531, %v1574
  %v1576 = vmul.f32 %v1546, %v1575
  %v1577 = vsub.f32 %v1532, %v1576
  %1579 = vset.pattern.permute.xlu0 0
  %1580 = vperm.xlu0 %1579, %v1575
  %v1581 = vpop.permute.xlu0 %1580
  %v1583 = vmul.f32 %v1385, %v1581
  %v1584 = vmul.f32 %v1387, %v1581
  %v1585 = vmul.f32 %v1456, %v1581
  %v1586 = vmul.f32 %v1458, %v1581
  %v1587 = vmul.f32 %v1527, %v1581
  %v1588 = vmul.f32 %v1529, %v1581
  %1590 = vset.pattern.permute.xlu0 0
  %1591 = vperm.xlu0 %1590, %v1577
  %v1592 = vpop.permute.xlu0 %1591
  %v1594 = vadd.f32 %v1583, %v1592
  %v1595 = vadd.f32 %v1584, %v1592
  %v1596 = vadd.f32 %v1585, %v1592
  %v1597 = vadd.f32 %v1586, %v1592
  %v1598 = vadd.f32 %v1587, %v1592
  %v1599 = vadd.f32 %v1588, %v1592
  %v1600 = vmax.f32 %v1594, 0.0
  %v1601 = vmax.f32 %v1595, 0.0
  %v1602 = vmax.f32 %v1596, 0.0
  %v1603 = vmax.f32 %v1597, 0.0
  %v1604 = vmax.f32 %v1598, 0.0
  %v1605 = vmax.f32 %v1599, 0.0
  %v1606 = vmul.f32 %v1600, %v696
  %v1607 = vmul.f32 %v1601, %v700
  %v1608 = vmul.f32 %v1602, %v704
  %v1609 = vmul.f32 %v1603, %v708
  %v1610 = vmul.f32 %v1604, %v712
  %v1611 = vmul.f32 %v1605, %v716
  %1612 = vst [vmem:[%s8] sm:$0xff] %v1606
  %1613 = vst [vmem:[%s8 + $0x8] sm:$0xff] %v1607
  %1614 = vst [vmem:[%s8 + $0x10] sm:$0xff] %v1608
  %s1615 = scalar_lea.vmem %s8, 24
  %1616 = vst [vmem:[%s1615] sm:$0xff] %v1609
  %1617 = vst [vmem:[%s1615 + $0x8] sm:$0xff] %v1610
  %1618 = vst [vmem:[%s1615 + $0x10] sm:$0xff] %v1611
  // Predicated region
  $region34: #{conv_block_forward.1} parent=0 // pred_check
    _
  $region35: #{conv_block_forward.1} parent=0 // pred_check_branch
    %1620 = sbr.rel (0) target = $region37
  $region36: #{conv_block_forward.1} parent=0 // pred_region
    _
  $region37: #{conv_block_forward.1} parent=0 // pred_fallthru
    _
  // Predicated region
  $region38: #{conv_block_forward.1} parent=0 // pred_check
    _
  $region39: #{conv_block_forward.1} parent=0 // pred_check_branch
    %1622 = sbr.rel (0) target = $region41
  $region40: #{conv_block_forward.1} parent=0 // pred_region
    _
  $region41: #{conv_block_forward.1} parent=0 // pred_fallthru
    _

</llo_original>
